<compile_context>
chip_gen: v6e
topology: v6e:2x2x1
jax: 0.10.0
libtpu: 0.0.40
codegen_flags: <defaults>
</compile_context>

<pallas_src>
import functools

import jax
import jax.numpy as jnp
from jax.experimental import pallas as pl
from jax.experimental.pallas import tpu as pltpu


def _swish(z):
    # z * sigmoid(z) via sigmoid(z) = 0.5*(1 + tanh(z/2)): tanh runs on the EUP
    # (its own bundle slot), no VPU divide.
    return z * (0.5 * (jnp.tanh(0.5 * z) + 1.0))


def _round_up(x, m):
    return ((x + m - 1) // m) * m


def output_block_kernel(blk_min_ref, blk_max_ref,            # scalar prefetch (SMEM)
                        idx_ref, rbf_ref, x_ref,
                        wrbf_ref, w1_ref, b1_ref, w2_ref, b2_ref, wout_ref,
                        o_ref, acc_ref, *, tile_n):
    n = pl.program_id(0)
    e = pl.program_id(1)

    @pl.when(e == 0)
    def _init():
        acc_ref[...] = jnp.zeros_like(acc_ref)

    node_lo = n * tile_n
    node_hi = node_lo + tile_n
    # Skip edge tiles that cannot hit this node block (cheap scalar test; exact
    # when edges are sorted by destination, harmless otherwise).
    overlap = jnp.logical_and(blk_max_ref[e] >= node_lo, blk_min_ref[e] < node_hi)

    @pl.when(overlap)
    def _scatter():
        # Edge tile: xm = lin_rbf(rbf) * x  ->  [tE, H]
        xm = jnp.dot(rbf_ref[...], wrbf_ref[...],
                     preferred_element_type=jnp.float32) * x_ref[...]

        tN = acc_ref.shape[0]
        tE = xm.shape[0]
        node_ids = node_lo + jax.lax.broadcasted_iota(jnp.int32, (tN, tE), 0)
        # idx_ref is a (1, tE) lane-major block; broadcast-compare -> [tN, tE].
        # Out-of-range / sentinel-padded indices never match -> zero contribution.
        onehot_t = (idx_ref[...] == node_ids).astype(jnp.bfloat16)
        # 0/1 is exact in bf16; xm accepts bf16 rounding (MXU-native rate);
        # accumulation stays f32.
        acc_ref[...] += jnp.dot(onehot_t, xm.astype(jnp.bfloat16),
                                preferred_element_type=jnp.float32)

    @pl.when(e == pl.num_programs(1) - 1)
    def _finalize():
        h = acc_ref[...]
        h = _swish(jnp.dot(h, w1_ref[...],
                           preferred_element_type=jnp.float32) + b1_ref[...])
        h = _swish(jnp.dot(h, w2_ref[...],
                           preferred_element_type=jnp.float32) + b2_ref[...])
        o_ref[...] = jnp.dot(h, wout_ref[...],
                             preferred_element_type=jnp.float32).astype(o_ref.dtype)


def output_block(rbf, x, idx, params, num_nodes, *, tile_e=1024, tile_n=1024):
    E, H = x.shape
    R = rbf.shape[1]
    out_channels = params["w_out"].shape[1]
    out_pad = _round_up(out_channels, 128)        # lane-dense (unmasked) finalize store

    # --- tile sizes / padding ------------------------------------------------
    tE = min(tile_e, _round_up(E, 128))           # edge tile: multiple of 128 lanes
    tN = min(tile_n, _round_up(num_nodes, 8))     # node tile: multiple of 8 sublanes
    E_pad = _round_up(E, tE)
    N_pad = _round_up(num_nodes, tN)

    idx = idx.astype(jnp.int32)
    if E_pad != E:
        pad_e = E_pad - E
        rbf = jnp.pad(rbf, ((0, pad_e), (0, 0)))
        x = jnp.pad(x, ((0, pad_e), (0, 0)))
        # Sentinel index >= N_pad: padded edges never match any node block.
        idx = jnp.pad(idx, (0, pad_e), constant_values=N_pad)

    n_eblk = E_pad // tE
    idx_blocks = idx.reshape(n_eblk, tE)
    blk_min = idx_blocks.min(axis=1).astype(jnp.int32)   # sentinel never lowers min
    blk_max = idx_blocks.max(axis=1).astype(jnp.int32)   # sentinel only disables skip
    idx_row = idx.reshape(1, E_pad)                       # lane-major index vector

    w_out = params["w_out"]
    if out_pad != out_channels:
        w_out = jnp.pad(w_out, ((0, 0), (0, out_pad - out_channels)))

    grid = (N_pad // tN, n_eblk)
    const = lambda n, e, bmin, bmax: (0, 0)

    flops = (2 * E_pad * R * H + E_pad * H            # lin_rbf + elementwise mul
             + 2 * E_pad * N_pad * H                  # one-hot scatter matmul
             + 2 * 2 * N_pad * H * H                  # two hidden layers
             + 2 * N_pad * H * out_pad)               # final projection
    bytes_accessed = 4 * (E_pad * (R + H + 1)
                          + R * H + 2 * H * H + 2 * H + H * out_pad
                          + N_pad * out_pad)

    kernel = functools.partial(output_block_kernel, tile_n=tN)

    out = pl.pallas_call(
        kernel,
        out_shape=jax.ShapeDtypeStruct((N_pad, out_pad), jnp.float32),
        grid_spec=pltpu.PrefetchScalarGridSpec(
            num_scalar_prefetch=2,                               # blk_min, blk_max
            grid=grid,
            in_specs=[
                pl.BlockSpec((1, tE), lambda n, e, bmin, bmax: (0, e)),   # idx (lane-major)
                pl.BlockSpec((tE, R), lambda n, e, bmin, bmax: (e, 0)),   # rbf edge tile
                pl.BlockSpec((tE, H), lambda n, e, bmin, bmax: (e, 0)),   # x edge tile
                pl.BlockSpec((R, H), const),                              # w_rbf (resident)
                pl.BlockSpec((H, H), const),                              # w1
                pl.BlockSpec((1, H), const),                              # b1
                pl.BlockSpec((H, H), const),                              # w2
                pl.BlockSpec((1, H), const),                              # b2
                pl.BlockSpec((H, out_pad), const),                        # w_out (lane-padded)
            ],
            out_specs=pl.BlockSpec((tN, out_pad), lambda n, e, bmin, bmax: (n, 0)),
            scratch_shapes=[pltpu.VMEM((tN, H), jnp.float32)],            # node accumulator
        ),
        compiler_params=pltpu.CompilerParams(
            # node blocks are independent (2-TC shard on v7x); edge axis is the
            # reduction carried in the VMEM accumulator.
            dimension_semantics=("parallel", "arbitrary"),
            vmem_limit_bytes=32 * 1024 * 1024,
        ),
        cost_estimate=pl.CostEstimate(
            flops=flops,
            transcendentals=2 * N_pad * H,
            bytes_accessed=bytes_accessed),
    )(blk_min, blk_max, idx_row, rbf, x,
      params["w_rbf"], params["w1"], params["b1"],
      params["w2"], params["b2"], w_out)

    return out[:num_nodes, :out_channels]


def reference(rbf, x, idx, params, num_nodes):
    xm = (rbf @ params["w_rbf"]) * x
    h = jax.ops.segment_sum(xm, idx, num_segments=num_nodes)
    h = jax.nn.silu(h @ params["w1"] + params["b1"])
    h = jax.nn.silu(h @ params["w2"] + params["b2"])
    return h @ params["w_out"]


if __name__ == "__main__":
    # Small shapes consistent with the module: E edges, N nodes, num_layers=2.
    num_radial = 8
    hidden_channels = 32
    out_channels = 16
    num_edges = 500        # not a tile multiple -> exercises edge padding
    num_nodes = 100        # not a tile multiple -> exercises node padding

    key = jax.random.PRNGKey(0)
    k = jax.random.split(key, 8)

    # Deterministic synthetic init (module's glorot_orthogonal / zero-fill
    # replaced with scaled normals so the output is non-trivial).
    params = {
        "w_rbf": jax.random.normal(k[0], (num_radial, hidden_channels), jnp.float32) * 0.1,
        "w1":    jax.random.normal(k[1], (hidden_channels, hidden_channels), jnp.float32) * 0.1,
        "b1":    jnp.zeros((1, hidden_channels), jnp.float32),
        "w2":    jax.random.normal(k[2], (hidden_channels, hidden_channels), jnp.float32) * 0.1,
        "b2":    jnp.zeros((1, hidden_channels), jnp.float32),
        "w_out": jax.random.normal(k[3], (hidden_channels, out_channels), jnp.float32) * 0.1,
    }

    rbf = jax.random.normal(k[4], (num_edges, num_radial), jnp.float32)
    x = jax.random.normal(k[5], (num_edges, hidden_channels), jnp.float32)
    idx = jax.random.randint(k[6], (num_edges,), 0, num_nodes, jnp.int32)

    ref = reference(rbf, x, idx, params, num_nodes)

    # Small tiles -> multi-step grid: (128/64, 512/128) = (2, 4).
    out = output_block(rbf, x, idx, params, num_nodes, tile_e=128, tile_n=64)
    out = jax.block_until_ready(out)
    assert out.shape == (num_nodes, out_channels)
    # bf16 rounding of the scatter operand -> slightly loose tolerance vs the
    # pure-f32 reference; accumulation itself is f32.
    assert jnp.allclose(out, ref, atol=3e-2, rtol=3e-2), "mismatch (unsorted edges)"

    # Edges sorted by destination node exercise the per-edge-block skip path.
    order = jnp.argsort(idx)
    out_sorted = output_block(rbf[order], x[order], idx[order], params, num_nodes,
                              tile_e=128, tile_n=64)
    out_sorted = jax.block_until_ready(out_sorted)
    assert jnp.allclose(out_sorted, ref, atol=3e-2, rtol=3e-2), "mismatch (sorted edges)"

    # Default (large) tiles: single node block, single edge block.
    out_big = jax.block_until_ready(output_block(rbf, x, idx, params, num_nodes))
    assert jnp.allclose(out_big, ref, atol=3e-2, rtol=3e-2), "mismatch (default tiles)"

    print("KERNEL_OK")
</pallas_src>

<mosaic_0001>
module attributes {stable_mosaic.version = 11 : i64} {
  func.func @output_block_kernel(%arg0: i32, %arg1: i32, %arg2: memref<4xi32, #tpu.memory_space<smem>>, %arg3: memref<4xi32, #tpu.memory_space<smem>>, %arg4: memref<1x128xi32, #tpu.memory_space<vmem>>, %arg5: memref<128x8xf32, #tpu.memory_space<vmem>>, %arg6: memref<128x32xf32, #tpu.memory_space<vmem>>, %arg7: memref<8x32xf32, #tpu.memory_space<vmem>>, %arg8: memref<32x32xf32, #tpu.memory_space<vmem>>, %arg9: memref<1x32xf32, #tpu.memory_space<vmem>>, %arg10: memref<32x32xf32, #tpu.memory_space<vmem>>, %arg11: memref<1x32xf32, #tpu.memory_space<vmem>>, %arg12: memref<32x128xf32, #tpu.memory_space<vmem>>, %arg13: memref<64x128xf32, #tpu.memory_space<vmem>>, %arg14: memref<64x32xf32, #tpu.memory_space<vmem>>) attributes {dimension_semantics = [#tpu.dimension_semantics<parallel>, #tpu.dimension_semantics<arbitrary>], iteration_bounds = array<i64: 2, 4>, scalar_prefetch = 2 : i64, scratch_operands = 1 : i64, tpu.core_type = #tpu.core_type<tc>, window_params = [{transform_indices = @transform_0, window_bounds = array<i64: 1, 128>}, {transform_indices = @transform_1, window_bounds = array<i64: 128, 8>}, {transform_indices = @transform_2, window_bounds = array<i64: 128, 32>}, {pipeline_mode = #tpu.pipeline_mode<synchronous>, transform_indices = @transform_3, window_bounds = array<i64: 8, 32>}, {pipeline_mode = #tpu.pipeline_mode<synchronous>, transform_indices = @transform_4, window_bounds = array<i64: 32, 32>}, {pipeline_mode = #tpu.pipeline_mode<synchronous>, transform_indices = @transform_5, window_bounds = array<i64: 1, 32>}, {pipeline_mode = #tpu.pipeline_mode<synchronous>, transform_indices = @transform_6, window_bounds = array<i64: 32, 32>}, {pipeline_mode = #tpu.pipeline_mode<synchronous>, transform_indices = @transform_7, window_bounds = array<i64: 1, 32>}, {pipeline_mode = #tpu.pipeline_mode<synchronous>, transform_indices = @transform_8, window_bounds = array<i64: 32, 128>}, {transform_indices = @transform_9, window_bounds = array<i64: 64, 128>}]} {
    %c0_i32 = arith.constant 0 : i32
    %0 = arith.cmpi eq, %arg1, %c0_i32 : i32
    %1 = arith.extui %0 : i1 to i32
    %c0_i32_0 = arith.constant 0 : i32
    %2 = arith.cmpi ne, %1, %c0_i32_0 : i32
    scf.if %2 {
      %cst = arith.constant 0.000000e+00 : f32
      %17 = vector.broadcast %cst : f32 to vector<64x32xf32>
      %c0 = arith.constant 0 : index
      %c0_4 = arith.constant 0 : index
      %18 = vector.load %arg14[%c0, %c0_4] : memref<64x32xf32, #tpu.memory_space<vmem>>, vector<64x32xf32>
      tpu.vector_store %arg14[%c0, %c0_4], %17 {strides = array<i32>} : memref<64x32xf32, #tpu.memory_space<vmem>>, vector<64x32xf32>,
    } else {
    }
    %c64_i32 = arith.constant 64 : i32
    %3 = arith.muli %arg0, %c64_i32 : i32
    %c64_i32_1 = arith.constant 64 : i32
    %4 = arith.addi %3, %c64_i32_1 : i32
    %5 = arith.index_cast %arg1 : i32 to index
    %6 = memref.load %arg3[%5] : memref<4xi32, #tpu.memory_space<smem>>
    %7 = arith.cmpi sge, %6, %3 : i32
    %8 = arith.index_cast %arg1 : i32 to index
    %9 = memref.load %arg2[%8] : memref<4xi32, #tpu.memory_space<smem>>
    %10 = arith.cmpi slt, %9, %4 : i32
    %11 = arith.andi %7, %10 : i1
    %12 = arith.extui %11 : i1 to i32
    %c0_i32_2 = arith.constant 0 : i32
    %13 = arith.cmpi ne, %12, %c0_i32_2 : i32
    scf.if %13 {
      %c0 = arith.constant 0 : index
      %c0_4 = arith.constant 0 : index
      %17 = vector.load %arg5[%c0, %c0_4] : memref<128x8xf32, #tpu.memory_space<vmem>>, vector<128x8xf32>
      %c0_5 = arith.constant 0 : index
      %c0_6 = arith.constant 0 : index
      %18 = vector.load %arg7[%c0_5, %c0_6] : memref<8x32xf32, #tpu.memory_space<vmem>>, vector<8x32xf32>
      %cst = arith.constant dense<0.000000e+00> : vector<128x32xf32>
      %19 = tpu.matmul %17, %18, %cst {dimension_numbers = #tpu.dot_dimension_numbers<[1], [0], [0], [1], [0, 0, 1, 1], [], []>} : vector<128x8xf32>, vector<8x32xf32>, vector<128x32xf32> -> vector<128x32xf32>
      %c0_7 = arith.constant 0 : index
      %c0_8 = arith.constant 0 : index
      %20 = vector.load %arg6[%c0_7, %c0_8] : memref<128x32xf32, #tpu.memory_space<vmem>>, vector<128x32xf32>
      %21 = arith.mulf %19, %20 : vector<128x32xf32>
      %22 = tpu.iota {dimensions = array<i32: 0>} : vector<64x128xi32>
      %23 = vector.broadcast %3 : i32 to vector<64x128xi32>
      %24 = arith.addi %23, %22 : vector<64x128xi32>
      %c0_9 = arith.constant 0 : index
      %c0_10 = arith.constant 0 : index
      %25 = vector.load %arg4[%c0_9, %c0_10] : memref<1x128xi32, #tpu.memory_space<vmem>>, vector<1x128xi32>
      %26 = vector.broadcast %25 : vector<1x128xi32> to vector<64x128xi32>
      %27 = arith.cmpi eq, %26, %24 : vector<64x128xi32>
      %28 = arith.extui %27 : vector<64x128xi1> to vector<64x128xi32>
      %29 = arith.sitofp %28 : vector<64x128xi32> to vector<64x128xf32>
      %30 = arith.truncf %29 : vector<64x128xf32> to vector<64x128xbf16>
      %c0_11 = arith.constant 0 : index
      %c0_12 = arith.constant 0 : index
      %31 = vector.load %arg14[%c0_11, %c0_12] : memref<64x32xf32, #tpu.memory_space<vmem>>, vector<64x32xf32>
      %32 = arith.truncf %21 : vector<128x32xf32> to vector<128x32xbf16>
      %cst_13 = arith.constant dense<0.000000e+00> : vector<64x32xf32>
      %33 = tpu.matmul %30, %32, %cst_13 {dimension_numbers = #tpu.dot_dimension_numbers<[1], [0], [0], [1], [0, 0, 1, 1], [], []>} : vector<64x128xbf16>, vector<128x32xbf16>, vector<64x32xf32> -> vector<64x32xf32>
      %34 = arith.addf %31, %33 : vector<64x32xf32>
      %c0_14 = arith.constant 0 : index
      %c0_15 = arith.constant 0 : index
      %35 = vector.load %arg14[%c0_14, %c0_15] : memref<64x32xf32, #tpu.memory_space<vmem>>, vector<64x32xf32>
      tpu.vector_store %arg14[%c0_14, %c0_15], %34 {strides = array<i32>} : memref<64x32xf32, #tpu.memory_space<vmem>>, vector<64x32xf32>,
    } else {
    }
    %c3_i32 = arith.constant 3 : i32
    %14 = arith.cmpi eq, %arg1, %c3_i32 : i32
    %15 = arith.extui %14 : i1 to i32
    %c0_i32_3 = arith.constant 0 : i32
    %16 = arith.cmpi ne, %15, %c0_i32_3 : i32
    scf.if %16 {
      %c0 = arith.constant 0 : index
      %c0_4 = arith.constant 0 : index
      %17 = vector.load %arg14[%c0, %c0_4] : memref<64x32xf32, #tpu.memory_space<vmem>>, vector<64x32xf32>
      %c0_5 = arith.constant 0 : index
      %c0_6 = arith.constant 0 : index
      %18 = vector.load %arg8[%c0_5, %c0_6] : memref<32x32xf32, #tpu.memory_space<vmem>>, vector<32x32xf32>
      %cst = arith.constant dense<0.000000e+00> : vector<64x32xf32>
      %19 = tpu.matmul %17, %18, %cst {dimension_numbers = #tpu.dot_dimension_numbers<[1], [0], [0], [1], [0, 0, 1, 1], [], []>} : vector<64x32xf32>, vector<32x32xf32>, vector<64x32xf32> -> vector<64x32xf32>
      %c0_7 = arith.constant 0 : index
      %c0_8 = arith.constant 0 : index
      %20 = vector.load %arg9[%c0_7, %c0_8] : memref<1x32xf32, #tpu.memory_space<vmem>>, vector<1x32xf32>
      %21 = vector.broadcast %20 : vector<1x32xf32> to vector<64x32xf32>
      %22 = arith.addf %19, %21 : vector<64x32xf32>
      %cst_9 = arith.constant 5.000000e-01 : f32
      %23 = vector.broadcast %cst_9 : f32 to vector<64x32xf32>
      %24 = arith.mulf %23, %22 : vector<64x32xf32>
      %25 = math.tanh %24 : vector<64x32xf32>
      %cst_10 = arith.constant 1.000000e+00 : f32
      %26 = vector.broadcast %cst_10 : f32 to vector<64x32xf32>
      %27 = arith.addf %25, %26 : vector<64x32xf32>
      %cst_11 = arith.constant 5.000000e-01 : f32
      %28 = vector.broadcast %cst_11 : f32 to vector<64x32xf32>
      %29 = arith.mulf %28, %27 : vector<64x32xf32>
      %30 = arith.mulf %22, %29 : vector<64x32xf32>
      %c0_12 = arith.constant 0 : index
      %c0_13 = arith.constant 0 : index
      %31 = vector.load %arg10[%c0_12, %c0_13] : memref<32x32xf32, #tpu.memory_space<vmem>>, vector<32x32xf32>
      %cst_14 = arith.constant dense<0.000000e+00> : vector<64x32xf32>
      %32 = tpu.matmul %30, %31, %cst_14 {dimension_numbers = #tpu.dot_dimension_numbers<[1], [0], [0], [1], [0, 0, 1, 1], [], []>} : vector<64x32xf32>, vector<32x32xf32>, vector<64x32xf32> -> vector<64x32xf32>
      %c0_15 = arith.constant 0 : index
      %c0_16 = arith.constant 0 : index
      %33 = vector.load %arg11[%c0_15, %c0_16] : memref<1x32xf32, #tpu.memory_space<vmem>>, vector<1x32xf32>
      %34 = vector.broadcast %33 : vector<1x32xf32> to vector<64x32xf32>
      %35 = arith.addf %32, %34 : vector<64x32xf32>
      %cst_17 = arith.constant 5.000000e-01 : f32
      %36 = vector.broadcast %cst_17 : f32 to vector<64x32xf32>
      %37 = arith.mulf %36, %35 : vector<64x32xf32>
      %38 = math.tanh %37 : vector<64x32xf32>
      %cst_18 = arith.constant 1.000000e+00 : f32
      %39 = vector.broadcast %cst_18 : f32 to vector<64x32xf32>
      %40 = arith.addf %38, %39 : vector<64x32xf32>
      %cst_19 = arith.constant 5.000000e-01 : f32
      %41 = vector.broadcast %cst_19 : f32 to vector<64x32xf32>
      %42 = arith.mulf %41, %40 : vector<64x32xf32>
      %43 = arith.mulf %35, %42 : vector<64x32xf32>
      %c0_20 = arith.constant 0 : index
      %c0_21 = arith.constant 0 : index
      %44 = vector.load %arg12[%c0_20, %c0_21] : memref<32x128xf32, #tpu.memory_space<vmem>>, vector<32x128xf32>
      %cst_22 = arith.constant dense<0.000000e+00> : vector<64x128xf32>
      %45 = tpu.matmul %43, %44, %cst_22 {dimension_numbers = #tpu.dot_dimension_numbers<[1], [0], [0], [1], [0, 0, 1, 1], [], []>} : vector<64x32xf32>, vector<32x128xf32>, vector<64x128xf32> -> vector<64x128xf32>
      %c0_23 = arith.constant 0 : index
      %c0_24 = arith.constant 0 : index
      %46 = vector.load %arg13[%c0_23, %c0_24] : memref<64x128xf32, #tpu.memory_space<vmem>>, vector<64x128xf32>
      tpu.vector_store %arg13[%c0_23, %c0_24], %45 {strides = array<i32>} : memref<64x128xf32, #tpu.memory_space<vmem>>, vector<64x128xf32>,
    } else {
    }
    return
  }
  func.func @transform_0(%arg0: i32, %arg1: i32, %arg2: memref<4xi32, #tpu.memory_space<smem>>, %arg3: memref<4xi32, #tpu.memory_space<smem>>) -> (i32, i32) {
    %c0_i32 = arith.constant 0 : i32
    %c0_i32_0 = arith.constant 0 : i32
    return %c0_i32, %arg1 : i32, i32
  }
  func.func @transform_1(%arg0: i32, %arg1: i32, %arg2: memref<4xi32, #tpu.memory_space<smem>>, %arg3: memref<4xi32, #tpu.memory_space<smem>>) -> (i32, i32) {
    %c0_i32 = arith.constant 0 : i32
    %c0_i32_0 = arith.constant 0 : i32
    return %arg1, %c0_i32 : i32, i32
  }
  func.func @transform_2(%arg0: i32, %arg1: i32, %arg2: memref<4xi32, #tpu.memory_space<smem>>, %arg3: memref<4xi32, #tpu.memory_space<smem>>) -> (i32, i32) {
    %c0_i32 = arith.constant 0 : i32
    %c0_i32_0 = arith.constant 0 : i32
    return %arg1, %c0_i32 : i32, i32
  }
  func.func @transform_3(%arg0: i32, %arg1: i32, %arg2: memref<4xi32, #tpu.memory_space<smem>>, %arg3: memref<4xi32, #tpu.memory_space<smem>>) -> (i32, i32) {
    %c0_i32 = arith.constant 0 : i32
    %c0_i32_0 = arith.constant 0 : i32
    %c0_i32_1 = arith.constant 0 : i32
    return %c0_i32, %c0_i32_0 : i32, i32
  }
  func.func @transform_4(%arg0: i32, %arg1: i32, %arg2: memref<4xi32, #tpu.memory_space<smem>>, %arg3: memref<4xi32, #tpu.memory_space<smem>>) -> (i32, i32) {
    %c0_i32 = arith.constant 0 : i32
    %c0_i32_0 = arith.constant 0 : i32
    %c0_i32_1 = arith.constant 0 : i32
    return %c0_i32, %c0_i32_0 : i32, i32
  }
  func.func @transform_5(%arg0: i32, %arg1: i32, %arg2: memref<4xi32, #tpu.memory_space<smem>>, %arg3: memref<4xi32, #tpu.memory_space<smem>>) -> (i32, i32) {
    %c0_i32 = arith.constant 0 : i32
    %c0_i32_0 = arith.constant 0 : i32
    %c0_i32_1 = arith.constant 0 : i32
    return %c0_i32, %c0_i32_0 : i32, i32
  }
  func.func @transform_6(%arg0: i32, %arg1: i32, %arg2: memref<4xi32, #tpu.memory_space<smem>>, %arg3: memref<4xi32, #tpu.memory_space<smem>>) -> (i32, i32) {
    %c0_i32 = arith.constant 0 : i32
    %c0_i32_0 = arith.constant 0 : i32
    %c0_i32_1 = arith.constant 0 : i32
    return %c0_i32, %c0_i32_0 : i32, i32
  }
  func.func @transform_7(%arg0: i32, %arg1: i32, %arg2: memref<4xi32, #tpu.memory_space<smem>>, %arg3: memref<4xi32, #tpu.memory_space<smem>>) -> (i32, i32) {
    %c0_i32 = arith.constant 0 : i32
    %c0_i32_0 = arith.constant 0 : i32
    %c0_i32_1 = arith.constant 0 : i32
    return %c0_i32, %c0_i32_0 : i32, i32
  }
  func.func @transform_8(%arg0: i32, %arg1: i32, %arg2: memref<4xi32, #tpu.memory_space<smem>>, %arg3: memref<4xi32, #tpu.memory_space<smem>>) -> (i32, i32) {
    %c0_i32 = arith.constant 0 : i32
    %c0_i32_0 = arith.constant 0 : i32
    %c0_i32_1 = arith.constant 0 : i32
    return %c0_i32, %c0_i32_0 : i32, i32
  }
  func.func @transform_9(%arg0: i32, %arg1: i32, %arg2: memref<4xi32, #tpu.memory_space<smem>>, %arg3: memref<4xi32, #tpu.memory_space<smem>>) -> (i32, i32) {
    %c0_i32 = arith.constant 0 : i32
    %c0_i32_0 = arith.constant 0 : i32
    return %arg0, %c0_i32 : i32, i32
  }
}

</mosaic_0001>

<llo_original>
// kernel: tpu_custom_call.1
$region0: #{tpu_custom_call.1}
  #allocation0 [shape = 'u32[]', space=smem, size = 0x4, offset = 0x4, fixed_abs, tag = 'smem constant byte address 0x4 - core index']
  #allocation1 [shape = 'u32[144,128]{1,0:T(1,128)}', space=vmem, size = 0x12000, scoped, tag = 'internal scratch']
  #allocation2 [shape = 'f32[64,32]{1,0:T(8,128)}', space=vmem, size = 0x8000, scoped, tag = 'scratch operand']
  #allocation3 [shape = 's32[1]{0}', space=sflag, size = 0x4, scoped, tag = 'scoped memory for tpu_custom_call.1']
  #allocation4 [shape = 'u8[512]{0}', space=smem, size = 0x200, scoped, tag = 'prefetched SMEM operand 0']
  #allocation5 [shape = 'u8[512]{0}', space=smem, size = 0x200, scoped, tag = 'prefetched SMEM operand 1']
  %s0 = inlined_call_operand.vmem [shape: s32[4], index: 0, kind: input, shape index: {}]
  %s1 = inlined_call_operand.vmem [shape: s32[4], index: 1, kind: input, shape index: {}]
  %s2 = inlined_call_operand.vmem [shape: s32[1,512], index: 2, kind: input, shape index: {}]
  %s3 = inlined_call_operand.vmem [shape: f32[512,8], index: 3, kind: input, shape index: {}]
  %s4 = inlined_call_operand.vmem [shape: f32[512,32], index: 4, kind: input, shape index: {}]
  %s5 = inlined_call_operand.vmem [shape: f32[8,32], index: 5, kind: input, shape index: {}]
  %s6 = inlined_call_operand.vmem [shape: f32[32,32], index: 6, kind: input, shape index: {}]
  %s7 = inlined_call_operand.vmem [shape: f32[1,32], index: 7, kind: input, shape index: {}]
  %s8 = inlined_call_operand.vmem [shape: f32[32,32], index: 8, kind: input, shape index: {}]
  %s9 = inlined_call_operand.vmem [shape: f32[1,32], index: 9, kind: input, shape index: {}]
  %s10 = inlined_call_operand.vmem [shape: f32[32,128], index: 10, kind: input, shape index: {}]
  %s11 = inlined_call_operand.hbm [shape: f32[128,128], index: 11, kind: output, shape index: {}]
  %s12 = sld [smem:[#allocation0]]
  $region81: #{tpu_custom_call.1} parent=0
    _
  %s14 = ssub.s32 1, %s12
  %s15 = scalar_select 0, %s14, %s12
  %s16 = sshll.u32 %s0, 4
  %s17 = int_to_ptr.vmem [resolvable:$true] %s16
  %19 = dma.vmem_to_smem %s17, 16, [#allocation4], [#allocation3]
  %s20 = sshll.u32 %s1, 4
  %s21 = int_to_ptr.vmem [resolvable:$true] %s20
  %23 = dma.vmem_to_smem %s21, 16, [#allocation5], [#allocation3]
  %24 = dma.done [#allocation3], 32
  %25 = sfence
  $region1: #{tpu_custom_call.1} parent=0
    #allocation6 [shape = 'u8[65536]{0}', space=vmem, size = 0x10000, scoped, tag = 'output window, operand 0']
    #allocation7 [shape = 's32[2]{0}', space=sflag, size = 0x8, scoped, tag = 'scoped memory for tpu_custom_call.1']
    %26 = vsyncpa [#allocation7], 0
    %s27 = scalar_lea.sflag [#allocation7], 1
    %28 = vsyncpa %s27, 0
    loop: start=0, step=1, limit=10
    $region2: #{tpu_custom_call.1} parent=1 // loop_pre_header
      _
    $region3: #{tpu_custom_call.1} parent=1 // loop_header
      %s30 = sphi 0, %s34
      %p31 = scmp.ge.s32.totalorder %s30, 10
      %s37 = sphi 0, %s49
      %s38 = sphi 0, %s45
      %s39 = sphi 0, %s37
      %s40 = sphi 0, %s38
      %s41 = sphi 0, %s39
      %s42 = sphi 0, %s40
      %s52 = sphi 0, %s54
      %s55 = sphi 0, %s52
      %s56 = sphi 0, %s55
      %s72 = sphi 0, %s56
      %s78 = sphi 0, %s80
      %s81 = sphi 0, %s78
      %s82 = sphi 0, %s81
      %s98 = sphi 0, %s82
      %s104 = sphi 0, %s106
      %s107 = sphi 0, %s104
      %s108 = sphi 0, %s107
      %s124 = sphi 0, %s108
      %s128 = sphi 0, %s128
      %s130 = sphi 0, %s128
      %s131 = sphi 0, %s130
      %s145 = sphi 0, %s131
      %s149 = sphi 0, %s149
      %s151 = sphi 0, %s149
      %s152 = sphi 0, %s151
      %s166 = sphi 0, %s152
      %s170 = sphi 0, %s170
      %s172 = sphi 0, %s170
      %s173 = sphi 0, %s172
      %s187 = sphi 0, %s173
      %s191 = sphi 0, %s191
      %s193 = sphi 0, %s191
      %s194 = sphi 0, %s193
      %s208 = sphi 0, %s194
      %s212 = sphi 0, %s212
      %s214 = sphi 0, %s212
      %s215 = sphi 0, %s214
      %s229 = sphi 0, %s215
      %s233 = sphi 0, %s233
      %s235 = sphi 0, %s233
      %s236 = sphi 0, %s235
      %s250 = sphi 0, %s236
      %s256 = sphi 0, %s258
      %s259 = sphi 0, %s256
      %s260 = sphi 0, %s259
      %s276 = sphi 0, %s260
    $region4: #{tpu_custom_call.1} parent=1 // loop_header_branch
      %33 = sbr.rel (%p31) target = $region8
    $region5: #{tpu_custom_call.1} parent=1 // loop_body
      %s35 = ssub.s32 %s30, 1
      %s36 = ssub.s32 %s30, 2
      %s43 = sadd.s32 1, %s38
      %p44 = scmp.ge.s32.totalorder %s43, 4
      %s45 = scalar_select %p44, 0, %s43
      %s46 = sadd.s32 1, %s37
      %s47 = scalar_select %p44, %s46, %s37
      %p48 = scmp.ge.s32.totalorder %s47, 2
      %s49 = scalar_select %p48, 0, %s47
      %s50 = ssub.s32 %s38, %s45
      %p51 = scmp.eq.s32.totalorder %s50, 0
      %s53 = sadd.s32 %s52, 1
      %s54 = scalar_select %p51, %s52, %s53
      %p57 = pneg %p51
      %p58 = scmp.eq.s32.totalorder %s30, 7
      %p59 = por %p57, %p58
      %p60 = scmp.ne.s32.totalorder %s52, %s55
      %p61 = scmp.eq.s32.totalorder %s30, 0
      %p62 = por %p60, %p61
      %p63 = scmp.ne.s32.totalorder %s52, %s55
      %p64 = scmp.eq.s32.totalorder %s35, 7
      %p65 = por %p63, %p64
      %p66 = scmp.ne.s32.totalorder %s55, %s56
      %p67 = scmp.eq.s32.totalorder %s35, 0
      %p68 = por %p66, %p67
      %p69 = scmp.ne.s32.totalorder %s55, %s56
      %p70 = scmp.eq.s32.totalorder %s36, 7
      %p71 = por %p69, %p70
      %p73 = scmp.ne.s32.totalorder %s56, %s72
      %p74 = scmp.eq.s32.totalorder %s36, 0
      %p75 = por %p73, %p74
      %s76 = ssub.s32 %s38, %s45
      %p77 = scmp.eq.s32.totalorder %s76, 0
      %s79 = sadd.s32 %s78, 1
      %s80 = scalar_select %p77, %s78, %s79
      %p83 = pneg %p77
      %p84 = scmp.eq.s32.totalorder %s30, 7
      %p85 = por %p83, %p84
      %p86 = scmp.ne.s32.totalorder %s78, %s81
      %p87 = scmp.eq.s32.totalorder %s30, 0
      %p88 = por %p86, %p87
      %p89 = scmp.ne.s32.totalorder %s78, %s81
      %p90 = scmp.eq.s32.totalorder %s35, 7
      %p91 = por %p89, %p90
      %p92 = scmp.ne.s32.totalorder %s81, %s82
      %p93 = scmp.eq.s32.totalorder %s35, 0
      %p94 = por %p92, %p93
      %p95 = scmp.ne.s32.totalorder %s81, %s82
      %p96 = scmp.eq.s32.totalorder %s36, 7
      %p97 = por %p95, %p96
      %p99 = scmp.ne.s32.totalorder %s82, %s98
      %p100 = scmp.eq.s32.totalorder %s36, 0
      %p101 = por %p99, %p100
      %s102 = ssub.s32 %s38, %s45
      %p103 = scmp.eq.s32.totalorder %s102, 0
      %s105 = sadd.s32 %s104, 1
      %s106 = scalar_select %p103, %s104, %s105
      %p109 = pneg %p103
      %p110 = scmp.eq.s32.totalorder %s30, 7
      %p111 = por %p109, %p110
      %p112 = scmp.ne.s32.totalorder %s104, %s107
      %p113 = scmp.eq.s32.totalorder %s30, 0
      %p114 = por %p112, %p113
      %p115 = scmp.ne.s32.totalorder %s104, %s107
      %p116 = scmp.eq.s32.totalorder %s35, 7
      %p117 = por %p115, %p116
      %p118 = scmp.ne.s32.totalorder %s107, %s108
      %p119 = scmp.eq.s32.totalorder %s35, 0
      %p120 = por %p118, %p119
      %p121 = scmp.ne.s32.totalorder %s107, %s108
      %p122 = scmp.eq.s32.totalorder %s36, 7
      %p123 = por %p121, %p122
      %p125 = scmp.ne.s32.totalorder %s108, %s124
      %p126 = scmp.eq.s32.totalorder %s36, 0
      %p127 = por %p125, %p126
      %s129 = sadd.s32 %s128, 1
      %p132 = scmp.eq.s32.totalorder %s30, 7
      %p133 = scmp.ne.s32.totalorder %s128, %s130
      %p134 = scmp.eq.s32.totalorder %s30, 0
      %p135 = por %p133, %p134
      %p136 = scmp.ne.s32.totalorder %s128, %s130
      %p137 = scmp.eq.s32.totalorder %s35, 7
      %p138 = por %p136, %p137
      %p139 = scmp.ne.s32.totalorder %s130, %s131
      %p140 = scmp.eq.s32.totalorder %s35, 0
      %p141 = por %p139, %p140
      %p142 = scmp.ne.s32.totalorder %s130, %s131
      %p143 = scmp.eq.s32.totalorder %s36, 7
      %p144 = por %p142, %p143
      %p146 = scmp.ne.s32.totalorder %s131, %s145
      %p147 = scmp.eq.s32.totalorder %s36, 0
      %p148 = por %p146, %p147
      %s150 = sadd.s32 %s149, 1
      %p153 = scmp.eq.s32.totalorder %s30, 7
      %p154 = scmp.ne.s32.totalorder %s149, %s151
      %p155 = scmp.eq.s32.totalorder %s30, 0
      %p156 = por %p154, %p155
      %p157 = scmp.ne.s32.totalorder %s149, %s151
      %p158 = scmp.eq.s32.totalorder %s35, 7
      %p159 = por %p157, %p158
      %p160 = scmp.ne.s32.totalorder %s151, %s152
      %p161 = scmp.eq.s32.totalorder %s35, 0
      %p162 = por %p160, %p161
      %p163 = scmp.ne.s32.totalorder %s151, %s152
      %p164 = scmp.eq.s32.totalorder %s36, 7
      %p165 = por %p163, %p164
      %p167 = scmp.ne.s32.totalorder %s152, %s166
      %p168 = scmp.eq.s32.totalorder %s36, 0
      %p169 = por %p167, %p168
      %s171 = sadd.s32 %s170, 1
      %p174 = scmp.eq.s32.totalorder %s30, 7
      %p175 = scmp.ne.s32.totalorder %s170, %s172
      %p176 = scmp.eq.s32.totalorder %s30, 0
      %p177 = por %p175, %p176
      %p178 = scmp.ne.s32.totalorder %s170, %s172
      %p179 = scmp.eq.s32.totalorder %s35, 7
      %p180 = por %p178, %p179
      %p181 = scmp.ne.s32.totalorder %s172, %s173
      %p182 = scmp.eq.s32.totalorder %s35, 0
      %p183 = por %p181, %p182
      %p184 = scmp.ne.s32.totalorder %s172, %s173
      %p185 = scmp.eq.s32.totalorder %s36, 7
      %p186 = por %p184, %p185
      %p188 = scmp.ne.s32.totalorder %s173, %s187
      %p189 = scmp.eq.s32.totalorder %s36, 0
      %p190 = por %p188, %p189
      %s192 = sadd.s32 %s191, 1
      %p195 = scmp.eq.s32.totalorder %s30, 7
      %p196 = scmp.ne.s32.totalorder %s191, %s193
      %p197 = scmp.eq.s32.totalorder %s30, 0
      %p198 = por %p196, %p197
      %p199 = scmp.ne.s32.totalorder %s191, %s193
      %p200 = scmp.eq.s32.totalorder %s35, 7
      %p201 = por %p199, %p200
      %p202 = scmp.ne.s32.totalorder %s193, %s194
      %p203 = scmp.eq.s32.totalorder %s35, 0
      %p204 = por %p202, %p203
      %p205 = scmp.ne.s32.totalorder %s193, %s194
      %p206 = scmp.eq.s32.totalorder %s36, 7
      %p207 = por %p205, %p206
      %p209 = scmp.ne.s32.totalorder %s194, %s208
      %p210 = scmp.eq.s32.totalorder %s36, 0
      %p211 = por %p209, %p210
      %s213 = sadd.s32 %s212, 1
      %p216 = scmp.eq.s32.totalorder %s30, 7
      %p217 = scmp.ne.s32.totalorder %s212, %s214
      %p218 = scmp.eq.s32.totalorder %s30, 0
      %p219 = por %p217, %p218
      %p220 = scmp.ne.s32.totalorder %s212, %s214
      %p221 = scmp.eq.s32.totalorder %s35, 7
      %p222 = por %p220, %p221
      %p223 = scmp.ne.s32.totalorder %s214, %s215
      %p224 = scmp.eq.s32.totalorder %s35, 0
      %p225 = por %p223, %p224
      %p226 = scmp.ne.s32.totalorder %s214, %s215
      %p227 = scmp.eq.s32.totalorder %s36, 7
      %p228 = por %p226, %p227
      %p230 = scmp.ne.s32.totalorder %s215, %s229
      %p231 = scmp.eq.s32.totalorder %s36, 0
      %p232 = por %p230, %p231
      %s234 = sadd.s32 %s233, 1
      %p237 = scmp.eq.s32.totalorder %s30, 7
      %p238 = scmp.ne.s32.totalorder %s233, %s235
      %p239 = scmp.eq.s32.totalorder %s30, 0
      %p240 = por %p238, %p239
      %p241 = scmp.ne.s32.totalorder %s233, %s235
      %p242 = scmp.eq.s32.totalorder %s35, 7
      %p243 = por %p241, %p242
      %p244 = scmp.ne.s32.totalorder %s235, %s236
      %p245 = scmp.eq.s32.totalorder %s35, 0
      %p246 = por %p244, %p245
      %p247 = scmp.ne.s32.totalorder %s235, %s236
      %p248 = scmp.eq.s32.totalorder %s36, 7
      %p249 = por %p247, %p248
      %p251 = scmp.ne.s32.totalorder %s236, %s250
      %p252 = scmp.eq.s32.totalorder %s36, 0
      %p253 = por %p251, %p252
      %s254 = ssub.s32 %s37, %s49
      %p255 = scmp.eq.s32.totalorder %s254, 0
      %s257 = sadd.s32 %s256, 1
      %s258 = scalar_select %p255, %s256, %s257
      %p261 = pneg %p255
      %p262 = scmp.eq.s32.totalorder %s30, 7
      %p263 = por %p261, %p262
      %p264 = scmp.ne.s32.totalorder %s256, %s259
      %p265 = scmp.eq.s32.totalorder %s30, 0
      %p266 = por %p264, %p265
      %p267 = scmp.ne.s32.totalorder %s256, %s259
      %p268 = scmp.eq.s32.totalorder %s35, 7
      %p269 = por %p267, %p268
      %p270 = scmp.ne.s32.totalorder %s259, %s260
      %p271 = scmp.eq.s32.totalorder %s35, 0
      %p272 = por %p270, %p271
      %p273 = scmp.ne.s32.totalorder %s259, %s260
      %p274 = scmp.eq.s32.totalorder %s36, 7
      %p275 = por %p273, %p274
      %p277 = scmp.ne.s32.totalorder %s260, %s276
      %p278 = scmp.eq.s32.totalorder %s36, 0
      %p279 = por %p277, %p278
      %p280 = scmp.le.s32.totalorder 1, %s30
      %p281 = scmp.lt.s32.totalorder %s30, 9
      %p282 = pnand %p280, %p281
      %p283 = pneg %p282
      // Predicated region
      $region9: #{tpu_custom_call.1} parent=5 // pred_check
        _
      $region10: #{tpu_custom_call.1} parent=5 // pred_check_branch
        %285 = sbr.rel (%p282) target = $region12
      $region11: #{tpu_custom_call.1} parent=5 // pred_region
        %s286 = ssub.s32 %s30, 1
        // Predicated region
        $region13: #{tpu_custom_call.1} parent=11 // pred_check
          %p287 = pneg %p141
        $region14: #{tpu_custom_call.1} parent=11 // pred_check_branch
          %289 = sbr.rel (%p287) target = $region16
        $region15: #{tpu_custom_call.1} parent=11 // pred_region
          _
        $region16: #{tpu_custom_call.1} parent=11 // pred_fallthru
          _
        // Predicated region
        $region17: #{tpu_custom_call.1} parent=11 // pred_check
          %p290 = pneg %p162
        $region18: #{tpu_custom_call.1} parent=11 // pred_check_branch
          %292 = sbr.rel (%p290) target = $region20
        $region19: #{tpu_custom_call.1} parent=11 // pred_region
          _
        $region20: #{tpu_custom_call.1} parent=11 // pred_fallthru
          _
        // Predicated region
        $region21: #{tpu_custom_call.1} parent=11 // pred_check
          %p293 = pneg %p183
        $region22: #{tpu_custom_call.1} parent=11 // pred_check_branch
          %295 = sbr.rel (%p293) target = $region24
        $region23: #{tpu_custom_call.1} parent=11 // pred_region
          _
        $region24: #{tpu_custom_call.1} parent=11 // pred_fallthru
          _
        // Predicated region
        $region25: #{tpu_custom_call.1} parent=11 // pred_check
          %p296 = pneg %p204
        $region26: #{tpu_custom_call.1} parent=11 // pred_check_branch
          %298 = sbr.rel (%p296) target = $region28
        $region27: #{tpu_custom_call.1} parent=11 // pred_region
          _
        $region28: #{tpu_custom_call.1} parent=11 // pred_fallthru
          _
        // Predicated region
        $region29: #{tpu_custom_call.1} parent=11 // pred_check
          %p299 = pneg %p225
        $region30: #{tpu_custom_call.1} parent=11 // pred_check_branch
          %301 = sbr.rel (%p299) target = $region32
        $region31: #{tpu_custom_call.1} parent=11 // pred_region
          _
        $region32: #{tpu_custom_call.1} parent=11 // pred_fallthru
          _
        // Predicated region
        $region33: #{tpu_custom_call.1} parent=11 // pred_check
          %p302 = pneg %p246
        $region34: #{tpu_custom_call.1} parent=11 // pred_check_branch
          %304 = sbr.rel (%p302) target = $region36
        $region35: #{tpu_custom_call.1} parent=11 // pred_region
          _
        $region36: #{tpu_custom_call.1} parent=11 // pred_fallthru
          _
      $region12: #{tpu_custom_call.1} parent=5 // pred_fallthru
        _
      %p305 = scmp.lt.s32.totalorder %s30, 8
      // Predicated region
      $region37: #{tpu_custom_call.1} parent=5 // pred_check
        %p306 = pneg %p305
      $region38: #{tpu_custom_call.1} parent=5 // pred_check_branch
        %308 = sbr.rel (%p306) target = $region40
      $region39: #{tpu_custom_call.1} parent=5 // pred_region
        // Predicated region
        $region41: #{tpu_custom_call.1} parent=39 // pred_check
          %p309 = pneg %p62
        $region42: #{tpu_custom_call.1} parent=39 // pred_check_branch
          %311 = sbr.rel (%p309) target = $region44
        $region43: #{tpu_custom_call.1} parent=39 // pred_region
          %p312 = scmp.lt.s32.totalorder %s38, 3
          %s313 = scalar_select %p312, %s38, 3
          %s314 = scalar_lea.vmem %s2, %s313
        $region44: #{tpu_custom_call.1} parent=39 // pred_fallthru
          _
        // Predicated region
        $region45: #{tpu_custom_call.1} parent=39 // pred_check
          %p315 = pneg %p88
        $region46: #{tpu_custom_call.1} parent=39 // pred_check_branch
          %317 = sbr.rel (%p315) target = $region48
        $region47: #{tpu_custom_call.1} parent=39 // pred_region
          %s318 = smul.u32 16, %s38
          %p319 = scmp.lt.s32.totalorder %s318, 63
          %s320 = scalar_select %p319, %s318, 63
          %s321 = smul.addr %s320, 8
          %s322 = scalar_lea.vmem %s3, %s321
          %s323 = smul.u32 16, %s38
        $region48: #{tpu_custom_call.1} parent=39 // pred_fallthru
          _
        // Predicated region
        $region49: #{tpu_custom_call.1} parent=39 // pred_check
          %p324 = pneg %p114
        $region50: #{tpu_custom_call.1} parent=39 // pred_check_branch
          %326 = sbr.rel (%p324) target = $region52
        $region51: #{tpu_custom_call.1} parent=39 // pred_region
          %s327 = smul.u32 16, %s38
          %p328 = scmp.lt.s32.totalorder %s327, 63
          %s329 = scalar_select %p328, %s327, 63
          %s330 = smul.addr %s329, 8
          %s331 = scalar_lea.vmem %s4, %s330
          %s332 = smul.u32 16, %s38
        $region52: #{tpu_custom_call.1} parent=39 // pred_fallthru
          _
      $region40: #{tpu_custom_call.1} parent=5 // pred_fallthru
        _
      %p333 = scmp.le.s32.totalorder 1, %s30
      %p334 = scmp.lt.s32.totalorder %s30, 9
      %p335 = pnand %p333, %p334
      %p336 = pneg %p335
      // Predicated region
      $region53: #{tpu_custom_call.1} parent=5 // pred_check
        _
      $region54: #{tpu_custom_call.1} parent=5 // pred_check_branch
        %338 = sbr.rel (%p335) target = $region56
      $region55: #{tpu_custom_call.1} parent=5 // pred_region
        %s339 = ssub.s32 %s30, 1
        %p340 = scmp.lt.s32.totalorder %s40, 3
        %s341 = scalar_select %p340, %s40, 3
        %s342 = scalar_lea.vmem %s2, %s341
        %p343 = pneg %p68
        %p344 = pneg %p65
        %s345 = smul.u32 16, %s40
        %p346 = scmp.lt.s32.totalorder %s345, 63
        %s347 = scalar_select %p346, %s345, 63
        %s348 = smul.addr %s347, 8
        %s349 = scalar_lea.vmem %s3, %s348
        %p350 = pneg %p94
        %p351 = pneg %p91
        %s352 = smul.u32 16, %s40
        %p353 = scmp.lt.s32.totalorder %s352, 63
        %s354 = scalar_select %p353, %s352, 63
        %s355 = smul.addr %s354, 8
        %s356 = scalar_lea.vmem %s4, %s355
        %p357 = pneg %p120
        %p358 = pneg %p117
        %p359 = pneg %p141
        %p360 = pneg %p138
        %p361 = pneg %p162
        %p362 = pneg %p159
        %p363 = pneg %p183
        %p364 = pneg %p180
        %p365 = pneg %p204
        %p366 = pneg %p201
        %p367 = pneg %p225
        %p368 = pneg %p222
        %p369 = pneg %p246
        %p370 = pneg %p243
        %p371 = pneg %p272
        %p372 = pneg %p269
        %s373 = sand.u32 %s259, 1
        %s374 = scalar_lea.sflag [#allocation7], %s373
        %s375 = sand.u32 %s259, 1
        %s376 = smul.addr %s375, 64
        %s377 = scalar_lea.vmem [#allocation6], %s376
        %p378 = scmp.lt.s32.totalorder %s40, 3
        %s379 = scalar_select %p378, %s40, 3
        %s380 = scalar_lea.vmem %s2, %s379
        %s381 = smul.u32 16, %s40
        %p382 = scmp.lt.s32.totalorder %s381, 63
        %s383 = scalar_select %p382, %s381, 63
        %s384 = smul.addr %s383, 8
        %s385 = scalar_lea.vmem %s3, %s384
        %s386 = smul.u32 16, %s40
        %s387 = smul.u32 16, %s40
        %p388 = scmp.lt.s32.totalorder %s387, 63
        %s389 = scalar_select %p388, %s387, 63
        %s390 = smul.addr %s389, 8
        %s391 = scalar_lea.vmem %s4, %s390
        %s392 = smul.u32 16, %s40
        %s393 = smul.u32 8, %s39
        %p395 = scmp.eq.s32.totalorder %s40, 0
        // Predicated region
        $region57: #{tpu_custom_call.1} parent=55 // pred_check
          %p396 = pneg %p395
        $region58: #{tpu_custom_call.1} parent=55 // pred_check_branch
          %398 = sbr.rel (%p396) target = $region60
        $region59: #{tpu_custom_call.1} parent=55 // pred_region
          %vm399 = vcmask 261120
          %400 = vst.msk [vmem:[#allocation2] sm:$0xff] %vm399, 0.0
          %401 = vst.msk [vmem:[#allocation2 + $0x8] sm:$0xff] %vm399, 0.0
          %402 = vst.msk [vmem:[#allocation2 + $0x10] sm:$0xff] %vm399, 0.0
          %403 = vst.msk [vmem:[#allocation2 + $0x18] sm:$0xff] %vm399, 0.0
          %404 = vst.msk [vmem:[#allocation2 + $0x20] sm:$0xff] %vm399, 0.0
          %405 = vst.msk [vmem:[#allocation2 + $0x28] sm:$0xff] %vm399, 0.0
          %406 = vst.msk [vmem:[#allocation2 + $0x30] sm:$0xff] %vm399, 0.0
          %407 = vst.msk [vmem:[#allocation2 + $0x38] sm:$0xff] %vm399, 0.0
        $region60: #{tpu_custom_call.1} parent=55 // pred_fallthru
          _
        %s408 = smul.u32 %s39, 64
        %s409 = sadd.s32 %s408, 64
        %s410 = sld [smem:[#allocation5 + %s40]]
        %p411 = scmp.ge.s32.totalorder %s410, %s408
        %s412 = sld [smem:[#allocation4 + %s40]]
        %p413 = scmp.lt.s32.totalorder %s412, %s409
        %p414 = pnand %p411, %p413
        %p415 = pneg %p414
        // Predicated region
        $region61: #{tpu_custom_call.1} parent=55 // pred_check
          _
        $region62: #{tpu_custom_call.1} parent=55 // pred_check_branch
          %417 = sbr.rel (%p414) target = $region64
        $region63: #{tpu_custom_call.1} parent=55 // pred_region
          %v418 = vld [vmem:[%s385] sm:$0xff]
          %v419 = vld [vmem:[%s385 + $0x8] sm:$0xff]
          %v420 = vld [vmem:[%s385 + $0x10] sm:$0xff]
          %v421 = vld [vmem:[%s385 + $0x18] sm:$0xff]
          %v422 = vld [vmem:[%s385 + $0x20] sm:$0xff]
          %v423 = vld [vmem:[%s385 + $0x28] sm:$0xff]
          %v424 = vld [vmem:[%s385 + $0x30] sm:$0xff]
          %v425 = vld [vmem:[%s385 + $0x38] sm:$0xff]
          %v426 = vld [vmem:[%s385 + $0x40] sm:$0xff]
          %v427 = vld [vmem:[%s385 + $0x48] sm:$0xff]
          %v428 = vld [vmem:[%s385 + $0x50] sm:$0xff]
          %v429 = vld [vmem:[%s385 + $0x58] sm:$0xff]
          %v430 = vld [vmem:[%s385 + $0x60] sm:$0xff]
          %v431 = vld [vmem:[%s385 + $0x68] sm:$0xff]
          %v432 = vld [vmem:[%s385 + $0x70] sm:$0xff]
          %v433 = vld [vmem:[%s385 + $0x78] sm:$0xff]
          %v434 = vld [vmem:[%s5] sm:$0xff]
          %vm435 = vcmask 64512
          %v437 = vsel %vm435, %v418, 0
          %v440 = vsel %vm435, %v419, 0
          %v443 = vsel %vm435, %v420, 0
          %v446 = vsel %vm435, %v421, 0
          %v449 = vsel %vm435, %v422, 0
          %v452 = vsel %vm435, %v423, 0
          %v455 = vsel %vm435, %v424, 0
          %v458 = vsel %vm435, %v425, 0
          %v461 = vsel %vm435, %v426, 0
          %v464 = vsel %vm435, %v427, 0
          %v467 = vsel %vm435, %v428, 0
          %v470 = vsel %vm435, %v429, 0
          %v473 = vsel %vm435, %v430, 0
          %v476 = vsel %vm435, %v431, 0
          %v479 = vsel %vm435, %v432, 0
          %v482 = vsel %vm435, %v433, 0
          %484 = vmatprep.subr.mxu0 0.0
          %485 = vmatpush1.msra.mxu0 0.0
          %486 = vmatprep.subr.mxu0 0.0
          %487 = vmatpush1.msra.mxu0 0.0
          %488 = vmatprep.subr.mxu0 0.0
          %489 = vmatpush1.msra.mxu0 0.0
          %490 = vmatprep.subr.mxu0 0.0
          %491 = vmatpush1.msra.mxu0 0.0
          %492 = vmatprep.subr.mxu0 0.0
          %493 = vmatpush1.msra.mxu0 0.0
          %494 = vmatprep.subr.mxu0 0.0
          %495 = vmatpush1.msra.mxu0 0.0
          %496 = vmatprep.subr.mxu0 0.0
          %497 = vmatpush1.msra.mxu0 0.0
          %498 = vmatprep.subr.mxu0 0.0
          %499 = vmatpush1.msra.mxu0 0.0
          %500 = vmatprep.subr.mxu0 0.0
          %501 = vmatpush1.msra.mxu0 0.0
          %502 = vmatprep.subr.mxu0 0.0
          %503 = vmatpush1.msra.mxu0 0.0
          %504 = vmatprep.subr.mxu0 0.0
          %505 = vmatpush1.msra.mxu0 0.0
          %506 = vmatprep.subr.mxu0 0.0
          %507 = vmatpush1.msra.mxu0 0.0
          %508 = vmatprep.subr.mxu0 0.0
          %509 = vmatpush1.msra.mxu0 0.0
          %510 = vmatprep.subr.mxu0 0.0
          %511 = vmatpush1.msra.mxu0 0.0
          %512 = vmatprep.subr.mxu0 0.0
          %513 = vmatpush1.msra.mxu0 0.0
          %514 = vmatprep.subr.mxu0 0.0
          %515 = vmatpush1.msra.mxu0 %v434
          %516 = vmatprep.subr.mxu0 0.0
          %517 = vmatpush2.msra.mxu0 0.0
          %518 = vmatprep.subr.mxu0 0.0
          %519 = vmatpush2.msra.mxu0 0.0
          %520 = vmatprep.subr.mxu0 0.0
          %521 = vmatpush2.msra.mxu0 0.0
          %522 = vmatprep.subr.mxu0 0.0
          %523 = vmatpush2.msra.mxu0 0.0
          %524 = vmatprep.subr.mxu0 0.0
          %525 = vmatpush2.msra.mxu0 0.0
          %526 = vmatprep.subr.mxu0 0.0
          %527 = vmatpush2.msra.mxu0 0.0
          %528 = vmatprep.subr.mxu0 0.0
          %529 = vmatpush2.msra.mxu0 0.0
          %530 = vmatprep.subr.mxu0 0.0
          %531 = vmatpush2.msra.mxu0 0.0
          %532 = vmatprep.subr.mxu0 0.0
          %533 = vmatpush2.msra.mxu0 0.0
          %534 = vmatprep.subr.mxu0 0.0
          %535 = vmatpush2.msra.mxu0 0.0
          %536 = vmatprep.subr.mxu0 0.0
          %537 = vmatpush2.msra.mxu0 0.0
          %538 = vmatprep.subr.mxu0 0.0
          %539 = vmatpush2.msra.mxu0 0.0
          %540 = vmatprep.subr.mxu0 0.0
          %541 = vmatpush2.msra.mxu0 0.0
          %542 = vmatprep.subr.mxu0 0.0
          %543 = vmatpush2.msra.mxu0 0.0
          %544 = vmatprep.subr.mxu0 0.0
          %545 = vmatpush2.msra.mxu0 0.0
          %546 = vmatprep.subr.mxu0 0.0
          %547 = vmatpush2.msra.mxu0 0.0
          %548 = vmatprep.mubr.f32.mxu0 0.0
          %549 = vmatmul.mubr.f32.gmra.mxu0 %v437
          %v550 = vpop.f32.mrf.mxu0
          %v551 = vadd.f32 0.0, %v550
          %v552 = vpop.f32.mrf.mxu0
          %553 = vmatprep.mubr.f32.mxu0 0.0
          %554 = vmatmul.mubr.f32.gmra.mxu0 %v440
          %v555 = vpop.f32.mrf.mxu0
          %v556 = vadd.f32 0.0, %v555
          %v557 = vpop.f32.mrf.mxu0
          %558 = vmatprep.mubr.f32.mxu0 0.0
          %559 = vmatmul.mubr.f32.gmra.mxu0 %v443
          %v560 = vpop.f32.mrf.mxu0
          %v561 = vadd.f32 0.0, %v560
          %v562 = vpop.f32.mrf.mxu0
          %563 = vmatprep.mubr.f32.mxu0 0.0
          %564 = vmatmul.mubr.f32.gmra.mxu0 %v446
          %v565 = vpop.f32.mrf.mxu0
          %v566 = vadd.f32 0.0, %v565
          %v567 = vpop.f32.mrf.mxu0
          %568 = vmatprep.mubr.f32.mxu0 0.0
          %569 = vmatmul.mubr.f32.gmra.mxu0 %v449
          %v570 = vpop.f32.mrf.mxu0
          %v571 = vadd.f32 0.0, %v570
          %v572 = vpop.f32.mrf.mxu0
          %573 = vmatprep.mubr.f32.mxu0 0.0
          %574 = vmatmul.mubr.f32.gmra.mxu0 %v452
          %v575 = vpop.f32.mrf.mxu0
          %v576 = vadd.f32 0.0, %v575
          %v577 = vpop.f32.mrf.mxu0
          %578 = vmatprep.mubr.f32.mxu0 0.0
          %579 = vmatmul.mubr.f32.gmra.mxu0 %v455
          %v580 = vpop.f32.mrf.mxu0
          %v581 = vadd.f32 0.0, %v580
          %v582 = vpop.f32.mrf.mxu0
          %583 = vmatprep.mubr.f32.mxu0 0.0
          %584 = vmatmul.mubr.f32.gmra.mxu0 %v458
          %v585 = vpop.f32.mrf.mxu0
          %v586 = vadd.f32 0.0, %v585
          %v587 = vpop.f32.mrf.mxu0
          %588 = vmatprep.mubr.f32.mxu0 0.0
          %589 = vmatmul.mubr.f32.gmra.mxu0 %v461
          %v590 = vpop.f32.mrf.mxu0
          %v591 = vadd.f32 0.0, %v590
          %v592 = vpop.f32.mrf.mxu0
          %593 = vmatprep.mubr.f32.mxu0 0.0
          %594 = vmatmul.mubr.f32.gmra.mxu0 %v464
          %v595 = vpop.f32.mrf.mxu0
          %v596 = vadd.f32 0.0, %v595
          %v597 = vpop.f32.mrf.mxu0
          %598 = vmatprep.mubr.f32.mxu0 0.0
          %599 = vmatmul.mubr.f32.gmra.mxu0 %v467
          %v600 = vpop.f32.mrf.mxu0
          %v601 = vadd.f32 0.0, %v600
          %v602 = vpop.f32.mrf.mxu0
          %603 = vmatprep.mubr.f32.mxu0 0.0
          %604 = vmatmul.mubr.f32.gmra.mxu0 %v470
          %v605 = vpop.f32.mrf.mxu0
          %v606 = vadd.f32 0.0, %v605
          %v607 = vpop.f32.mrf.mxu0
          %608 = vmatprep.mubr.f32.mxu0 0.0
          %609 = vmatmul.mubr.f32.gmra.mxu0 %v473
          %v610 = vpop.f32.mrf.mxu0
          %v611 = vadd.f32 0.0, %v610
          %v612 = vpop.f32.mrf.mxu0
          %613 = vmatprep.mubr.f32.mxu0 0.0
          %614 = vmatmul.mubr.f32.gmra.mxu0 %v476
          %v615 = vpop.f32.mrf.mxu0
          %v616 = vadd.f32 0.0, %v615
          %v617 = vpop.f32.mrf.mxu0
          %618 = vmatprep.mubr.f32.mxu0 0.0
          %619 = vmatmul.mubr.f32.gmra.mxu0 %v479
          %v620 = vpop.f32.mrf.mxu0
          %v621 = vadd.f32 0.0, %v620
          %v622 = vpop.f32.mrf.mxu0
          %623 = vmatprep.mubr.f32.mxu0 0.0
          %624 = vmatmul.mubr.f32.gmra.mxu0 %v482
          %v625 = vpop.f32.mrf.mxu0
          %v626 = vadd.f32 0.0, %v625
          %v627 = vpop.f32.mrf.mxu0
          %628 = vdwg.mxu0
          %v629 = vld [vmem:[%s391] sm:$0xff]
          %v630 = vld [vmem:[%s391 + $0x8] sm:$0xff]
          %v631 = vld [vmem:[%s391 + $0x10] sm:$0xff]
          %v632 = vld [vmem:[%s391 + $0x18] sm:$0xff]
          %v633 = vld [vmem:[%s391 + $0x20] sm:$0xff]
          %v634 = vld [vmem:[%s391 + $0x28] sm:$0xff]
          %v635 = vld [vmem:[%s391 + $0x30] sm:$0xff]
          %v636 = vld [vmem:[%s391 + $0x38] sm:$0xff]
          %v637 = vld [vmem:[%s391 + $0x40] sm:$0xff]
          %v638 = vld [vmem:[%s391 + $0x48] sm:$0xff]
          %v639 = vld [vmem:[%s391 + $0x50] sm:$0xff]
          %v640 = vld [vmem:[%s391 + $0x58] sm:$0xff]
          %v641 = vld [vmem:[%s391 + $0x60] sm:$0xff]
          %v642 = vld [vmem:[%s391 + $0x68] sm:$0xff]
          %v643 = vld [vmem:[%s391 + $0x70] sm:$0xff]
          %v644 = vld [vmem:[%s391 + $0x78] sm:$0xff]
          %v645 = vmul.f32 %v551, %v629
          %v646 = vmul.f32 %v556, %v630
          %v647 = vmul.f32 %v561, %v631
          %v648 = vmul.f32 %v566, %v632
          %v649 = vmul.f32 %v571, %v633
          %v650 = vmul.f32 %v576, %v634
          %v651 = vmul.f32 %v581, %v635
          %v652 = vmul.f32 %v586, %v636
          %v653 = vmul.f32 %v591, %v637
          %v654 = vmul.f32 %v596, %v638
          %v655 = vmul.f32 %v601, %v639
          %v656 = vmul.f32 %v606, %v640
          %v657 = vmul.f32 %v611, %v641
          %v658 = vmul.f32 %v616, %v642
          %v659 = vmul.f32 %v621, %v643
          %v660 = vmul.f32 %v626, %v644
          %v661 = vlaneseq
          %v662 = vshrl.u32 %v661, 7
          %v663 = vadd.s32 %v662, 8
          %v664 = vadd.s32 %v662, 16
          %v665 = vadd.s32 %v662, 24
          %v666 = vadd.s32 %v662, 32
          %v667 = vadd.s32 %v662, 40
          %v668 = vadd.s32 %v662, 48
          %v669 = vadd.s32 %v662, 56
          %v670 = vstv %s408
          %v671 = vadd.s32 %v670, %v662
          %v672 = vadd.s32 %v670, %v663
          %v673 = vadd.s32 %v670, %v664
          %v674 = vadd.s32 %v670, %v665
          %v675 = vadd.s32 %v670, %v666
          %v676 = vadd.s32 %v670, %v667
          %v677 = vadd.s32 %v670, %v668
          %v678 = vadd.s32 %v670, %v669
          %v679 = vld [vmem:[%s380] sm:$0x1]
          %v680 = vlaneseq
          %v681 = vshrl.u32 %v680, 7
          %v682 = vsub.s32 0, %v681
          %v683 = vrot.slane %v679, %v682
          %vm684 = vcmp.eq.s32.totalorder %v683, %v671
          %vm685 = vcmp.eq.s32.totalorder %v683, %v672
          %vm686 = vcmp.eq.s32.totalorder %v683, %v673
          %vm687 = vcmp.eq.s32.totalorder %v683, %v674
          %vm688 = vcmp.eq.s32.totalorder %v683, %v675
          %vm689 = vcmp.eq.s32.totalorder %v683, %v676
          %vm690 = vcmp.eq.s32.totalorder %v683, %v677
          %vm691 = vcmp.eq.s32.totalorder %v683, %v678
          %v692 = vsel %vm684, 1, 0
          %v693 = vsel %vm685, 1, 0
          %v694 = vsel %vm686, 1, 0
          %v695 = vsel %vm687, 1, 0
          %v696 = vsel %vm688, 1, 0
          %v697 = vsel %vm689, 1, 0
          %v698 = vsel %vm690, 1, 0
          %v699 = vsel %vm691, 1, 0
          %v700 = vcvt.s32.f32 %v692
          %v701 = vcvt.s32.f32 %v693
          %v702 = vcvt.s32.f32 %v694
          %v703 = vcvt.s32.f32 %v695
          %v704 = vcvt.s32.f32 %v696
          %v705 = vcvt.s32.f32 %v697
          %v706 = vcvt.s32.f32 %v698
          %v707 = vcvt.s32.f32 %v699
          %v708 = vpack.c.bf16 %v701, %v700
          %v709 = vpack.c.bf16 %v703, %v702
          %v710 = vpack.c.bf16 %v705, %v704
          %v711 = vpack.c.bf16 %v707, %v706
          %v712 = vld [vmem:[#allocation2] sm:$0xff]
          %v713 = vld [vmem:[#allocation2 + $0x8] sm:$0xff]
          %v714 = vld [vmem:[#allocation2 + $0x10] sm:$0xff]
          %v715 = vld [vmem:[#allocation2 + $0x18] sm:$0xff]
          %v716 = vld [vmem:[#allocation2 + $0x20] sm:$0xff]
          %v717 = vld [vmem:[#allocation2 + $0x28] sm:$0xff]
          %v718 = vld [vmem:[#allocation2 + $0x30] sm:$0xff]
          %v719 = vld [vmem:[#allocation2 + $0x38] sm:$0xff]
          %v720 = vpack.c.bf16 %v646, %v645
          %v721 = vpack.c.bf16 %v648, %v647
          %v722 = vpack.c.bf16 %v650, %v649
          %v723 = vpack.c.bf16 %v652, %v651
          %v724 = vpack.c.bf16 %v654, %v653
          %v725 = vpack.c.bf16 %v656, %v655
          %v726 = vpack.c.bf16 %v658, %v657
          %v727 = vpack.c.bf16 %v660, %v659
          %728 = vmatprep.subr.bf16.mxu0 0
          %729 = vmatpush1.bf16.msra.mxu0 %v727
          %730 = vmatprep.subr.bf16.mxu0 0
          %731 = vmatpush1.bf16.msra.mxu0 %v726
          %732 = vmatprep.subr.bf16.mxu0 0
          %733 = vmatpush1.bf16.msra.mxu0 %v725
          %734 = vmatprep.subr.bf16.mxu0 0
          %735 = vmatpush1.bf16.msra.mxu0 %v724
          %736 = vmatprep.subr.bf16.mxu0 0
          %737 = vmatpush1.bf16.msra.mxu0 %v723
          %738 = vmatprep.subr.bf16.mxu0 0
          %739 = vmatpush1.bf16.msra.mxu0 %v722
          %740 = vmatprep.subr.bf16.mxu0 0
          %741 = vmatpush1.bf16.msra.mxu0 %v721
          %742 = vmatprep.subr.bf16.mxu0 0
          %743 = vmatpush1.bf16.msra.mxu0 %v720
          %744 = vmatprep.subr.bf16.mxu0 0
          %745 = vmatpush2.bf16.msra.mxu0 0
          %746 = vmatprep.subr.bf16.mxu0 0
          %747 = vmatpush2.bf16.msra.mxu0 0
          %748 = vmatprep.subr.bf16.mxu0 0
          %749 = vmatpush2.bf16.msra.mxu0 0
          %750 = vmatprep.subr.bf16.mxu0 0
          %751 = vmatpush2.bf16.msra.mxu0 0
          %752 = vmatprep.subr.bf16.mxu0 0
          %753 = vmatpush2.bf16.msra.mxu0 0
          %754 = vmatprep.subr.bf16.mxu0 0
          %755 = vmatpush2.bf16.msra.mxu0 0
          %756 = vmatprep.subr.bf16.mxu0 0
          %757 = vmatpush2.bf16.msra.mxu0 0
          %758 = vmatprep.subr.bf16.mxu0 0
          %759 = vmatpush2.bf16.msra.mxu0 0
          %760 = vmatprep.mubr.bf16.mxu0 0
          %761 = vmatmul.mubr.bf16.gmra.mxu0 %v708
          %v762 = vpop.f32.mrf.mxu0
          %v763 = vadd.f32 0.0, %v762
          %v764 = vpop.f32.mrf.mxu0
          %v765 = vpop.f32.mrf.mxu0
          %v766 = vadd.f32 0.0, %v765
          %v767 = vpop.f32.mrf.mxu0
          %768 = vmatprep.mubr.bf16.mxu0 0
          %769 = vmatmul.mubr.bf16.gmra.mxu0 %v709
          %v770 = vpop.f32.mrf.mxu0
          %v771 = vadd.f32 0.0, %v770
          %v772 = vpop.f32.mrf.mxu0
          %v773 = vpop.f32.mrf.mxu0
          %v774 = vadd.f32 0.0, %v773
          %v775 = vpop.f32.mrf.mxu0
          %776 = vmatprep.mubr.bf16.mxu0 0
          %777 = vmatmul.mubr.bf16.gmra.mxu0 %v710
          %v778 = vpop.f32.mrf.mxu0
          %v779 = vadd.f32 0.0, %v778
          %v780 = vpop.f32.mrf.mxu0
          %v781 = vpop.f32.mrf.mxu0
          %v782 = vadd.f32 0.0, %v781
          %v783 = vpop.f32.mrf.mxu0
          %784 = vmatprep.mubr.bf16.mxu0 0
          %785 = vmatmul.mubr.bf16.gmra.mxu0 %v711
          %v786 = vpop.f32.mrf.mxu0
          %v787 = vadd.f32 0.0, %v786
          %v788 = vpop.f32.mrf.mxu0
          %v789 = vpop.f32.mrf.mxu0
          %v790 = vadd.f32 0.0, %v789
          %v791 = vpop.f32.mrf.mxu0
          %792 = vdwg.mxu0
          %v793 = vadd.f32 %v712, %v763
          %v794 = vadd.f32 %v713, %v766
          %v795 = vadd.f32 %v714, %v771
          %v796 = vadd.f32 %v715, %v774
          %v797 = vadd.f32 %v716, %v779
          %v798 = vadd.f32 %v717, %v782
          %v799 = vadd.f32 %v718, %v787
          %v800 = vadd.f32 %v719, %v790
          %vm801 = vcmask 261120
          %802 = vst.msk [vmem:[#allocation2] sm:$0xff] %vm801, %v793
          %803 = vst.msk [vmem:[#allocation2 + $0x8] sm:$0xff] %vm801, %v794
          %804 = vst.msk [vmem:[#allocation2 + $0x10] sm:$0xff] %vm801, %v795
          %805 = vst.msk [vmem:[#allocation2 + $0x18] sm:$0xff] %vm801, %v796
          %806 = vst.msk [vmem:[#allocation2 + $0x20] sm:$0xff] %vm801, %v797
          %807 = vst.msk [vmem:[#allocation2 + $0x28] sm:$0xff] %vm801, %v798
          %808 = vst.msk [vmem:[#allocation2 + $0x30] sm:$0xff] %vm801, %v799
          %809 = vst.msk [vmem:[#allocation2 + $0x38] sm:$0xff] %vm801, %v800
        $region64: #{tpu_custom_call.1} parent=55 // pred_fallthru
          _
        %p810 = scmp.eq.s32.totalorder %s40, 3
        // Predicated region
        $region65: #{tpu_custom_call.1} parent=55 // pred_check
          %p811 = pneg %p810
        $region66: #{tpu_custom_call.1} parent=55 // pred_check_branch
          %813 = sbr.rel (%p811) target = $region68
        $region67: #{tpu_custom_call.1} parent=55 // pred_region
          %v814 = vld [vmem:[#allocation2] sm:$0xff]
          %v815 = vld [vmem:[#allocation2 + $0x8] sm:$0xff]
          %v816 = vld [vmem:[#allocation2 + $0x10] sm:$0xff]
          %v817 = vld [vmem:[#allocation2 + $0x18] sm:$0xff]
          %v818 = vld [vmem:[#allocation2 + $0x20] sm:$0xff]
          %v819 = vld [vmem:[#allocation2 + $0x28] sm:$0xff]
          %v820 = vld [vmem:[#allocation2 + $0x30] sm:$0xff]
          %v821 = vld [vmem:[#allocation2 + $0x38] sm:$0xff]
          %v822 = vld [vmem:[%s6] sm:$0xff]
          %v823 = vld [vmem:[%s6 + $0x8] sm:$0xff]
          %v824 = vld [vmem:[%s6 + $0x10] sm:$0xff]
          %v825 = vld [vmem:[%s6 + $0x18] sm:$0xff]
          %v826 = vld [vmem:[%s7] sm:$0x1]
          %v828 = vlaneseq
          %v829 = vshrl.u32 %v828, 7
          %v830 = vsub.s32 0, %v829
          %v831 = vrot.slane %v826, %v830
          %vm833 = vcmask 261120
          %v835 = vsel %vm833, %v814, 0
          %v838 = vsel %vm833, %v815, 0
          %v841 = vsel %vm833, %v816, 0
          %v844 = vsel %vm833, %v817, 0
          %v847 = vsel %vm833, %v818, 0
          %v850 = vsel %vm833, %v819, 0
          %v853 = vsel %vm833, %v820, 0
          %v856 = vsel %vm833, %v821, 0
          %858 = vmatprep.subr.mxu0 0.0
          %859 = vmatpush1.msra.mxu0 0.0
          %860 = vmatprep.subr.mxu0 0.0
          %861 = vmatpush1.msra.mxu0 0.0
          %862 = vmatprep.subr.mxu0 0.0
          %863 = vmatpush1.msra.mxu0 0.0
          %864 = vmatprep.subr.mxu0 0.0
          %865 = vmatpush1.msra.mxu0 0.0
          %866 = vmatprep.subr.mxu0 0.0
          %867 = vmatpush1.msra.mxu0 0.0
          %868 = vmatprep.subr.mxu0 0.0
          %869 = vmatpush1.msra.mxu0 0.0
          %870 = vmatprep.subr.mxu0 0.0
          %871 = vmatpush1.msra.mxu0 0.0
          %872 = vmatprep.subr.mxu0 0.0
          %873 = vmatpush1.msra.mxu0 0.0
          %874 = vmatprep.subr.mxu0 0.0
          %875 = vmatpush1.msra.mxu0 0.0
          %876 = vmatprep.subr.mxu0 0.0
          %877 = vmatpush1.msra.mxu0 0.0
          %878 = vmatprep.subr.mxu0 0.0
          %879 = vmatpush1.msra.mxu0 0.0
          %880 = vmatprep.subr.mxu0 0.0
          %881 = vmatpush1.msra.mxu0 0.0
          %882 = vmatprep.subr.mxu0 0.0
          %883 = vmatpush1.msra.mxu0 %v825
          %884 = vmatprep.subr.mxu0 0.0
          %885 = vmatpush1.msra.mxu0 %v824
          %886 = vmatprep.subr.mxu0 0.0
          %887 = vmatpush1.msra.mxu0 %v823
          %888 = vmatprep.subr.mxu0 0.0
          %889 = vmatpush1.msra.mxu0 %v822
          %890 = vmatprep.subr.mxu0 0.0
          %891 = vmatpush2.msra.mxu0 0.0
          %892 = vmatprep.subr.mxu0 0.0
          %893 = vmatpush2.msra.mxu0 0.0
          %894 = vmatprep.subr.mxu0 0.0
          %895 = vmatpush2.msra.mxu0 0.0
          %896 = vmatprep.subr.mxu0 0.0
          %897 = vmatpush2.msra.mxu0 0.0
          %898 = vmatprep.subr.mxu0 0.0
          %899 = vmatpush2.msra.mxu0 0.0
          %900 = vmatprep.subr.mxu0 0.0
          %901 = vmatpush2.msra.mxu0 0.0
          %902 = vmatprep.subr.mxu0 0.0
          %903 = vmatpush2.msra.mxu0 0.0
          %904 = vmatprep.subr.mxu0 0.0
          %905 = vmatpush2.msra.mxu0 0.0
          %906 = vmatprep.subr.mxu0 0.0
          %907 = vmatpush2.msra.mxu0 0.0
          %908 = vmatprep.subr.mxu0 0.0
          %909 = vmatpush2.msra.mxu0 0.0
          %910 = vmatprep.subr.mxu0 0.0
          %911 = vmatpush2.msra.mxu0 0.0
          %912 = vmatprep.subr.mxu0 0.0
          %913 = vmatpush2.msra.mxu0 0.0
          %914 = vmatprep.subr.mxu0 0.0
          %915 = vmatpush2.msra.mxu0 0.0
          %916 = vmatprep.subr.mxu0 0.0
          %917 = vmatpush2.msra.mxu0 0.0
          %918 = vmatprep.subr.mxu0 0.0
          %919 = vmatpush2.msra.mxu0 0.0
          %920 = vmatprep.subr.mxu0 0.0
          %921 = vmatpush2.msra.mxu0 0.0
          %922 = vmatprep.mubr.f32.mxu0 0.0
          %923 = vmatmul.mubr.f32.gmra.mxu0 %v835
          %v924 = vpop.f32.mrf.mxu0
          %v925 = vadd.f32 %v831, %v924
          %v926 = vpop.f32.mrf.mxu0
          %927 = vmatprep.mubr.f32.mxu0 0.0
          %928 = vmatmul.mubr.f32.gmra.mxu0 %v838
          %v929 = vpop.f32.mrf.mxu0
          %v930 = vadd.f32 %v831, %v929
          %v931 = vpop.f32.mrf.mxu0
          %932 = vmatprep.mubr.f32.mxu0 0.0
          %933 = vmatmul.mubr.f32.gmra.mxu0 %v841
          %v934 = vpop.f32.mrf.mxu0
          %v935 = vadd.f32 %v831, %v934
          %v936 = vpop.f32.mrf.mxu0
          %937 = vmatprep.mubr.f32.mxu0 0.0
          %938 = vmatmul.mubr.f32.gmra.mxu0 %v844
          %v939 = vpop.f32.mrf.mxu0
          %v940 = vadd.f32 %v831, %v939
          %v941 = vpop.f32.mrf.mxu0
          %942 = vmatprep.mubr.f32.mxu0 0.0
          %943 = vmatmul.mubr.f32.gmra.mxu0 %v847
          %v944 = vpop.f32.mrf.mxu0
          %v945 = vadd.f32 %v831, %v944
          %v946 = vpop.f32.mrf.mxu0
          %947 = vmatprep.mubr.f32.mxu0 0.0
          %948 = vmatmul.mubr.f32.gmra.mxu0 %v850
          %v949 = vpop.f32.mrf.mxu0
          %v950 = vadd.f32 %v831, %v949
          %v951 = vpop.f32.mrf.mxu0
          %952 = vmatprep.mubr.f32.mxu0 0.0
          %953 = vmatmul.mubr.f32.gmra.mxu0 %v853
          %v954 = vpop.f32.mrf.mxu0
          %v955 = vadd.f32 %v831, %v954
          %v956 = vpop.f32.mrf.mxu0
          %957 = vmatprep.mubr.f32.mxu0 0.0
          %958 = vmatmul.mubr.f32.gmra.mxu0 %v856
          %v959 = vpop.f32.mrf.mxu0
          %v960 = vadd.f32 %v831, %v959
          %v961 = vpop.f32.mrf.mxu0
          %962 = vdwg.mxu0
          %v963 = vmul.f32 %v925, 0.5
          %v964 = vmul.f32 %v930, 0.5
          %v965 = vmul.f32 %v935, 0.5
          %v966 = vmul.f32 %v940, 0.5
          %v967 = vmul.f32 %v945, 0.5
          %v968 = vmul.f32 %v950, 0.5
          %v969 = vmul.f32 %v955, 0.5
          %v970 = vmul.f32 %v960, 0.5
          %v971 = vtanh.pop %v963
          %v972 = vtanh.pop %v964
          %v973 = vtanh.pop %v965
          %v974 = vtanh.pop %v966
          %v975 = vtanh.pop %v967
          %v976 = vtanh.pop %v968
          %v977 = vtanh.pop %v969
          %v978 = vtanh.pop %v970
          %v979 = vadd.f32 %v971, 1.0
          %v980 = vadd.f32 %v972, 1.0
          %v981 = vadd.f32 %v973, 1.0
          %v982 = vadd.f32 %v974, 1.0
          %v983 = vadd.f32 %v975, 1.0
          %v984 = vadd.f32 %v976, 1.0
          %v985 = vadd.f32 %v977, 1.0
          %v986 = vadd.f32 %v978, 1.0
          %v987 = vmul.f32 %v979, 0.5
          %v988 = vmul.f32 %v980, 0.5
          %v989 = vmul.f32 %v981, 0.5
          %v990 = vmul.f32 %v982, 0.5
          %v991 = vmul.f32 %v983, 0.5
          %v992 = vmul.f32 %v984, 0.5
          %v993 = vmul.f32 %v985, 0.5
          %v994 = vmul.f32 %v986, 0.5
          %v995 = vmul.f32 %v925, %v987
          %v996 = vmul.f32 %v930, %v988
          %v997 = vmul.f32 %v935, %v989
          %v998 = vmul.f32 %v940, %v990
          %v999 = vmul.f32 %v945, %v991
          %v1000 = vmul.f32 %v950, %v992
          %v1001 = vmul.f32 %v955, %v993
          %v1002 = vmul.f32 %v960, %v994
          %v1003 = vld [vmem:[%s8] sm:$0xff]
          %v1004 = vld [vmem:[%s8 + $0x8] sm:$0xff]
          %v1005 = vld [vmem:[%s8 + $0x10] sm:$0xff]
          %v1006 = vld [vmem:[%s8 + $0x18] sm:$0xff]
          %v1007 = vld [vmem:[%s9] sm:$0x1]
          %v1009 = vlaneseq
          %v1010 = vshrl.u32 %v1009, 7
          %v1011 = vsub.s32 0, %v1010
          %v1012 = vrot.slane %v1007, %v1011
          %v1015 = vsel %vm833, %v995, 0
          %v1018 = vsel %vm833, %v996, 0
          %v1021 = vsel %vm833, %v997, 0
          %v1024 = vsel %vm833, %v998, 0
          %v1027 = vsel %vm833, %v999, 0
          %v1030 = vsel %vm833, %v1000, 0
          %v1033 = vsel %vm833, %v1001, 0
          %v1036 = vsel %vm833, %v1002, 0
          %1038 = vmatprep.subr.mxu0 0.0
          %1039 = vmatpush1.msra.mxu0 0.0
          %1040 = vmatprep.subr.mxu0 0.0
          %1041 = vmatpush1.msra.mxu0 0.0
          %1042 = vmatprep.subr.mxu0 0.0
          %1043 = vmatpush1.msra.mxu0 0.0
          %1044 = vmatprep.subr.mxu0 0.0
          %1045 = vmatpush1.msra.mxu0 0.0
          %1046 = vmatprep.subr.mxu0 0.0
          %1047 = vmatpush1.msra.mxu0 0.0
          %1048 = vmatprep.subr.mxu0 0.0
          %1049 = vmatpush1.msra.mxu0 0.0
          %1050 = vmatprep.subr.mxu0 0.0
          %1051 = vmatpush1.msra.mxu0 0.0
          %1052 = vmatprep.subr.mxu0 0.0
          %1053 = vmatpush1.msra.mxu0 0.0
          %1054 = vmatprep.subr.mxu0 0.0
          %1055 = vmatpush1.msra.mxu0 0.0
          %1056 = vmatprep.subr.mxu0 0.0
          %1057 = vmatpush1.msra.mxu0 0.0
          %1058 = vmatprep.subr.mxu0 0.0
          %1059 = vmatpush1.msra.mxu0 0.0
          %1060 = vmatprep.subr.mxu0 0.0
          %1061 = vmatpush1.msra.mxu0 0.0
          %1062 = vmatprep.subr.mxu0 0.0
          %1063 = vmatpush1.msra.mxu0 %v1006
          %1064 = vmatprep.subr.mxu0 0.0
          %1065 = vmatpush1.msra.mxu0 %v1005
          %1066 = vmatprep.subr.mxu0 0.0
          %1067 = vmatpush1.msra.mxu0 %v1004
          %1068 = vmatprep.subr.mxu0 0.0
          %1069 = vmatpush1.msra.mxu0 %v1003
          %1070 = vmatprep.subr.mxu0 0.0
          %1071 = vmatpush2.msra.mxu0 0.0
          %1072 = vmatprep.subr.mxu0 0.0
          %1073 = vmatpush2.msra.mxu0 0.0
          %1074 = vmatprep.subr.mxu0 0.0
          %1075 = vmatpush2.msra.mxu0 0.0
          %1076 = vmatprep.subr.mxu0 0.0
          %1077 = vmatpush2.msra.mxu0 0.0
          %1078 = vmatprep.subr.mxu0 0.0
          %1079 = vmatpush2.msra.mxu0 0.0
          %1080 = vmatprep.subr.mxu0 0.0
          %1081 = vmatpush2.msra.mxu0 0.0
          %1082 = vmatprep.subr.mxu0 0.0
          %1083 = vmatpush2.msra.mxu0 0.0
          %1084 = vmatprep.subr.mxu0 0.0
          %1085 = vmatpush2.msra.mxu0 0.0
          %1086 = vmatprep.subr.mxu0 0.0
          %1087 = vmatpush2.msra.mxu0 0.0
          %1088 = vmatprep.subr.mxu0 0.0
          %1089 = vmatpush2.msra.mxu0 0.0
          %1090 = vmatprep.subr.mxu0 0.0
          %1091 = vmatpush2.msra.mxu0 0.0
          %1092 = vmatprep.subr.mxu0 0.0
          %1093 = vmatpush2.msra.mxu0 0.0
          %1094 = vmatprep.subr.mxu0 0.0
          %1095 = vmatpush2.msra.mxu0 0.0
          %1096 = vmatprep.subr.mxu0 0.0
          %1097 = vmatpush2.msra.mxu0 0.0
          %1098 = vmatprep.subr.mxu0 0.0
          %1099 = vmatpush2.msra.mxu0 0.0
          %1100 = vmatprep.subr.mxu0 0.0
          %1101 = vmatpush2.msra.mxu0 0.0
          %1102 = vmatprep.mubr.f32.mxu0 0.0
          %1103 = vmatmul.mubr.f32.gmra.mxu0 %v1015
          %v1104 = vpop.f32.mrf.mxu0
          %v1105 = vadd.f32 %v1012, %v1104
          %v1106 = vpop.f32.mrf.mxu0
          %1107 = vmatprep.mubr.f32.mxu0 0.0
          %1108 = vmatmul.mubr.f32.gmra.mxu0 %v1018
          %v1109 = vpop.f32.mrf.mxu0
          %v1110 = vadd.f32 %v1012, %v1109
          %v1111 = vpop.f32.mrf.mxu0
          %1112 = vmatprep.mubr.f32.mxu0 0.0
          %1113 = vmatmul.mubr.f32.gmra.mxu0 %v1021
          %v1114 = vpop.f32.mrf.mxu0
          %v1115 = vadd.f32 %v1012, %v1114
          %v1116 = vpop.f32.mrf.mxu0
          %1117 = vmatprep.mubr.f32.mxu0 0.0
          %1118 = vmatmul.mubr.f32.gmra.mxu0 %v1024
          %v1119 = vpop.f32.mrf.mxu0
          %v1120 = vadd.f32 %v1012, %v1119
          %v1121 = vpop.f32.mrf.mxu0
          %1122 = vmatprep.mubr.f32.mxu0 0.0
          %1123 = vmatmul.mubr.f32.gmra.mxu0 %v1027
          %v1124 = vpop.f32.mrf.mxu0
          %v1125 = vadd.f32 %v1012, %v1124
          %v1126 = vpop.f32.mrf.mxu0
          %1127 = vmatprep.mubr.f32.mxu0 0.0
          %1128 = vmatmul.mubr.f32.gmra.mxu0 %v1030
          %v1129 = vpop.f32.mrf.mxu0
          %v1130 = vadd.f32 %v1012, %v1129
          %v1131 = vpop.f32.mrf.mxu0
          %1132 = vmatprep.mubr.f32.mxu0 0.0
          %1133 = vmatmul.mubr.f32.gmra.mxu0 %v1033
          %v1134 = vpop.f32.mrf.mxu0
          %v1135 = vadd.f32 %v1012, %v1134
          %v1136 = vpop.f32.mrf.mxu0
          %1137 = vmatprep.mubr.f32.mxu0 0.0
          %1138 = vmatmul.mubr.f32.gmra.mxu0 %v1036
          %v1139 = vpop.f32.mrf.mxu0
          %v1140 = vadd.f32 %v1012, %v1139
          %v1141 = vpop.f32.mrf.mxu0
          %1142 = vdwg.mxu0
          %v1143 = vmul.f32 %v1105, 0.5
          %v1144 = vmul.f32 %v1110, 0.5
          %v1145 = vmul.f32 %v1115, 0.5
          %v1146 = vmul.f32 %v1120, 0.5
          %v1147 = vmul.f32 %v1125, 0.5
          %v1148 = vmul.f32 %v1130, 0.5
          %v1149 = vmul.f32 %v1135, 0.5
          %v1150 = vmul.f32 %v1140, 0.5
          %v1151 = vtanh.pop %v1143
          %v1152 = vtanh.pop %v1144
          %v1153 = vtanh.pop %v1145
          %v1154 = vtanh.pop %v1146
          %v1155 = vtanh.pop %v1147
          %v1156 = vtanh.pop %v1148
          %v1157 = vtanh.pop %v1149
          %v1158 = vtanh.pop %v1150
          %v1159 = vadd.f32 %v1151, 1.0
          %v1160 = vadd.f32 %v1152, 1.0
          %v1161 = vadd.f32 %v1153, 1.0
          %v1162 = vadd.f32 %v1154, 1.0
          %v1163 = vadd.f32 %v1155, 1.0
          %v1164 = vadd.f32 %v1156, 1.0
          %v1165 = vadd.f32 %v1157, 1.0
          %v1166 = vadd.f32 %v1158, 1.0
          %v1167 = vmul.f32 %v1159, 0.5
          %v1168 = vmul.f32 %v1160, 0.5
          %v1169 = vmul.f32 %v1161, 0.5
          %v1170 = vmul.f32 %v1162, 0.5
          %v1171 = vmul.f32 %v1163, 0.5
          %v1172 = vmul.f32 %v1164, 0.5
          %v1173 = vmul.f32 %v1165, 0.5
          %v1174 = vmul.f32 %v1166, 0.5
          %v1175 = vmul.f32 %v1105, %v1167
          %v1176 = vmul.f32 %v1110, %v1168
          %v1177 = vmul.f32 %v1115, %v1169
          %v1178 = vmul.f32 %v1120, %v1170
          %v1179 = vmul.f32 %v1125, %v1171
          %v1180 = vmul.f32 %v1130, %v1172
          %v1181 = vmul.f32 %v1135, %v1173
          %v1182 = vmul.f32 %v1140, %v1174
          %v1183 = vld [vmem:[%s10] sm:$0xff]
          %v1184 = vld [vmem:[%s10 + $0x8] sm:$0xff]
          %v1185 = vld [vmem:[%s10 + $0x10] sm:$0xff]
          %v1186 = vld [vmem:[%s10 + $0x18] sm:$0xff]
          %v1188 = vsel %vm833, %v1175, 0
          %v1191 = vsel %vm833, %v1176, 0
          %v1194 = vsel %vm833, %v1177, 0
          %v1197 = vsel %vm833, %v1178, 0
          %v1200 = vsel %vm833, %v1179, 0
          %v1203 = vsel %vm833, %v1180, 0
          %v1206 = vsel %vm833, %v1181, 0
          %v1209 = vsel %vm833, %v1182, 0
          %1211 = vmatprep.subr.mxu0 0.0
          %1212 = vmatpush1.msra.mxu0 0.0
          %1213 = vmatprep.subr.mxu0 0.0
          %1214 = vmatpush1.msra.mxu0 0.0
          %1215 = vmatprep.subr.mxu0 0.0
          %1216 = vmatpush1.msra.mxu0 0.0
          %1217 = vmatprep.subr.mxu0 0.0
          %1218 = vmatpush1.msra.mxu0 0.0
          %1219 = vmatprep.subr.mxu0 0.0
          %1220 = vmatpush1.msra.mxu0 0.0
          %1221 = vmatprep.subr.mxu0 0.0
          %1222 = vmatpush1.msra.mxu0 0.0
          %1223 = vmatprep.subr.mxu0 0.0
          %1224 = vmatpush1.msra.mxu0 0.0
          %1225 = vmatprep.subr.mxu0 0.0
          %1226 = vmatpush1.msra.mxu0 0.0
          %1227 = vmatprep.subr.mxu0 0.0
          %1228 = vmatpush1.msra.mxu0 0.0
          %1229 = vmatprep.subr.mxu0 0.0
          %1230 = vmatpush1.msra.mxu0 0.0
          %1231 = vmatprep.subr.mxu0 0.0
          %1232 = vmatpush1.msra.mxu0 0.0
          %1233 = vmatprep.subr.mxu0 0.0
          %1234 = vmatpush1.msra.mxu0 0.0
          %1235 = vmatprep.subr.mxu0 0.0
          %1236 = vmatpush1.msra.mxu0 %v1186
          %1237 = vmatprep.subr.mxu0 0.0
          %1238 = vmatpush1.msra.mxu0 %v1185
          %1239 = vmatprep.subr.mxu0 0.0
          %1240 = vmatpush1.msra.mxu0 %v1184
          %1241 = vmatprep.subr.mxu0 0.0
          %1242 = vmatpush1.msra.mxu0 %v1183
          %1243 = vmatprep.subr.mxu0 0.0
          %1244 = vmatpush2.msra.mxu0 0.0
          %1245 = vmatprep.subr.mxu0 0.0
          %1246 = vmatpush2.msra.mxu0 0.0
          %1247 = vmatprep.subr.mxu0 0.0
          %1248 = vmatpush2.msra.mxu0 0.0
          %1249 = vmatprep.subr.mxu0 0.0
          %1250 = vmatpush2.msra.mxu0 0.0
          %1251 = vmatprep.subr.mxu0 0.0
          %1252 = vmatpush2.msra.mxu0 0.0
          %1253 = vmatprep.subr.mxu0 0.0
          %1254 = vmatpush2.msra.mxu0 0.0
          %1255 = vmatprep.subr.mxu0 0.0
          %1256 = vmatpush2.msra.mxu0 0.0
          %1257 = vmatprep.subr.mxu0 0.0
          %1258 = vmatpush2.msra.mxu0 0.0
          %1259 = vmatprep.subr.mxu0 0.0
          %1260 = vmatpush2.msra.mxu0 0.0
          %1261 = vmatprep.subr.mxu0 0.0
          %1262 = vmatpush2.msra.mxu0 0.0
          %1263 = vmatprep.subr.mxu0 0.0
          %1264 = vmatpush2.msra.mxu0 0.0
          %1265 = vmatprep.subr.mxu0 0.0
          %1266 = vmatpush2.msra.mxu0 0.0
          %1267 = vmatprep.subr.mxu0 0.0
          %1268 = vmatpush2.msra.mxu0 0.0
          %1269 = vmatprep.subr.mxu0 0.0
          %1270 = vmatpush2.msra.mxu0 0.0
          %1271 = vmatprep.subr.mxu0 0.0
          %1272 = vmatpush2.msra.mxu0 0.0
          %1273 = vmatprep.subr.mxu0 0.0
          %1274 = vmatpush2.msra.mxu0 0.0
          %1275 = vmatprep.mubr.f32.mxu0 0.0
          %1276 = vmatmul.mubr.f32.gmra.mxu0 %v1188
          %v1277 = vpop.f32.mrf.mxu0
          %v1278 = vadd.f32 0.0, %v1277
          %v1279 = vpop.f32.mrf.mxu0
          %1280 = vmatprep.mubr.f32.mxu0 0.0
          %1281 = vmatmul.mubr.f32.gmra.mxu0 %v1191
          %v1282 = vpop.f32.mrf.mxu0
          %v1283 = vadd.f32 0.0, %v1282
          %v1284 = vpop.f32.mrf.mxu0
          %1285 = vmatprep.mubr.f32.mxu0 0.0
          %1286 = vmatmul.mubr.f32.gmra.mxu0 %v1194
          %v1287 = vpop.f32.mrf.mxu0
          %v1288 = vadd.f32 0.0, %v1287
          %v1289 = vpop.f32.mrf.mxu0
          %1290 = vmatprep.mubr.f32.mxu0 0.0
          %1291 = vmatmul.mubr.f32.gmra.mxu0 %v1197
          %v1292 = vpop.f32.mrf.mxu0
          %v1293 = vadd.f32 0.0, %v1292
          %v1294 = vpop.f32.mrf.mxu0
          %1295 = vmatprep.mubr.f32.mxu0 0.0
          %1296 = vmatmul.mubr.f32.gmra.mxu0 %v1200
          %v1297 = vpop.f32.mrf.mxu0
          %v1298 = vadd.f32 0.0, %v1297
          %v1299 = vpop.f32.mrf.mxu0
          %1300 = vmatprep.mubr.f32.mxu0 0.0
          %1301 = vmatmul.mubr.f32.gmra.mxu0 %v1203
          %v1302 = vpop.f32.mrf.mxu0
          %v1303 = vadd.f32 0.0, %v1302
          %v1304 = vpop.f32.mrf.mxu0
          %1305 = vmatprep.mubr.f32.mxu0 0.0
          %1306 = vmatmul.mubr.f32.gmra.mxu0 %v1206
          %v1307 = vpop.f32.mrf.mxu0
          %v1308 = vadd.f32 0.0, %v1307
          %v1309 = vpop.f32.mrf.mxu0
          %1310 = vmatprep.mubr.f32.mxu0 0.0
          %1311 = vmatmul.mubr.f32.gmra.mxu0 %v1209
          %v1312 = vpop.f32.mrf.mxu0
          %v1313 = vadd.f32 0.0, %v1312
          %v1314 = vpop.f32.mrf.mxu0
          %1315 = vdwg.mxu0
          %1316 = vst [vmem:[%s377] sm:$0xff] %v1278
          %1317 = vst [vmem:[%s377 + $0x8] sm:$0xff] %v1283
          %1318 = vst [vmem:[%s377 + $0x10] sm:$0xff] %v1288
          %1319 = vst [vmem:[%s377 + $0x18] sm:$0xff] %v1293
          %1320 = vst [vmem:[%s377 + $0x20] sm:$0xff] %v1298
          %1321 = vst [vmem:[%s377 + $0x28] sm:$0xff] %v1303
          %1322 = vst [vmem:[%s377 + $0x30] sm:$0xff] %v1308
          %1323 = vst [vmem:[%s377 + $0x38] sm:$0xff] %v1313
        $region68: #{tpu_custom_call.1} parent=55 // pred_fallthru
          _
        %s1324 = sand.u32 %s259, 1
        %s1325 = scalar_lea.sflag [#allocation7], %s1324
        %s1326 = sand.u32 %s259, 1
        %s1327 = smul.addr %s1326, 64
        %s1328 = scalar_lea.vmem [#allocation6], %s1327
        // Predicated region
        $region69: #{tpu_custom_call.1} parent=55 // pred_check
          %p1329 = pneg %p269
        $region70: #{tpu_custom_call.1} parent=55 // pred_check_branch
          %1331 = sbr.rel (%p1329) target = $region72
        $region71: #{tpu_custom_call.1} parent=55 // pred_region
          %s1332 = smul.u32 8, %s39
          %s1334 = ssub.s32 1024, 1024
          %1335 = vsyncadd %s1325, %s1334
          %s1336 = smul.addr %s1332, 128
          %s1337 = scalar_lea.hbm %s11, %s1336
          %s1338 = sshll.u32 %s1328, 4
          %s1339 = int_to_ptr.vmem [resolvable:$true] %s1338
          %1344 = dma.vmem_to_hbm [thread:$0]  %s1339, 1024, %s1337, %s1325, 128, 128, 8
        $region72: #{tpu_custom_call.1} parent=55 // pred_fallthru
          _
      $region56: #{tpu_custom_call.1} parent=5 // pred_fallthru
        _
      %p1345 = scmp.le.s32.totalorder 2, %s30
      // Predicated region
      $region73: #{tpu_custom_call.1} parent=5 // pred_check
        %p1346 = pneg %p1345
      $region74: #{tpu_custom_call.1} parent=5 // pred_check_branch
        %1348 = sbr.rel (%p1346) target = $region76
      $region75: #{tpu_custom_call.1} parent=5 // pred_region
        %s1349 = ssub.s32 %s30, 2
        // Predicated region
        $region77: #{tpu_custom_call.1} parent=75 // pred_check
          %p1350 = pneg %p275
        $region78: #{tpu_custom_call.1} parent=75 // pred_check_branch
          %1352 = sbr.rel (%p1350) target = $region80
        $region79: #{tpu_custom_call.1} parent=75 // pred_region
          %s1353 = sand.u32 %s260, 1
          %s1354 = scalar_lea.sflag [#allocation7], %s1353
          %s1355 = sand.u32 %s260, 1
          %s1356 = smul.addr %s1355, 64
          %s1357 = scalar_lea.vmem [#allocation6], %s1356
          %1358 = dma.done %s1354, 1024
        $region80: #{tpu_custom_call.1} parent=75 // pred_fallthru
          _
      $region76: #{tpu_custom_call.1} parent=5 // pred_fallthru
        _
    $region6: #{tpu_custom_call.1} parent=1 // loop_footer
      %s34 = sadd.s32 1, %s30
    $region7: #{tpu_custom_call.1} parent=1 // loop_footer_branch
      %29 = sbr.rel target = $region3
    $region8: #{tpu_custom_call.1} parent=1 // loop_exit
      _
    %1359 = vsyncpa [#allocation7], 1
    %s1360 = scalar_lea.sflag [#allocation7], 1
    %1361 = vsyncpa %s1360, 1

</llo_original>
